<compile_context>
chip_gen: v7x
topology: tpu7x:2x2x1
jax: 0.10.0
libtpu: 0.0.40
codegen_flags: <defaults>
</compile_context>

<pallas_src>
import jax
import jax.numpy as jnp
from jax import lax
from jax.experimental import pallas as pl
from jax.experimental.pallas import tpu as pltpu


def cartpole_lstm_kernel(
    obs_ref, act_ref, h0_ref, c0_ref,
    w_fc_ref, b_fc_ref,
    w_ih_fc_ref, w_ih_act_ref, w_hh_ref, b_lstm_ref,
    w_head_ref, b_head_ref, w_out_ref, b_out_ref,
    out_ref, hn_ref, cn_ref,
    hs_scratch,
):
    TB = obs_ref.shape[0]
    A = act_ref.shape[-1]
    Bp, L = h0_ref.shape
    T = TB // Bp

    # ---------- Phase 1: batched input-side math (off the serial chain) ------
    fc = jnp.tanh(
        jnp.dot(obs_ref[...], w_fc_ref[...], preferred_element_type=jnp.float32)
        + b_fc_ref[...])                                       # (T*Bp, H1)

    # One-hot action projection on the VPU (avoids a K=A MXU push).
    act2d = act_ref[...]
    gate_act = act2d[:, 0:1] * w_ih_act_ref[0:1, :]
    for a in range(1, A):
        gate_act = gate_act + act2d[:, a:a + 1] * w_ih_act_ref[a:a + 1, :]

    gate_in = (
        jnp.dot(fc, w_ih_fc_ref[...], preferred_element_type=jnp.float32)
        + gate_act + b_lstm_ref[...])                          # (T*Bp, 4L)

    # ---------- Phase 2: serial LSTM recurrence ------------------------------
    # Only h@W_hh + elementwise per step.  PyTorch gate order: i, f, g, o.
    h = h0_ref[...]
    c = c0_ref[...]
    w_hh = w_hh_ref[...]
    for t in range(T):                      # T small & static -> full unroll
        gates = gate_in[t * Bp:(t + 1) * Bp, :] + jnp.dot(
            h, w_hh, preferred_element_type=jnp.float32)       # (Bp, 4L)
        # Full-width activations: 2 EUP pushes, slice afterwards.
        sig = jax.nn.sigmoid(gates)
        tnh = jnp.tanh(gates)
        i_g = sig[:, 0 * L:1 * L]
        f_g = sig[:, 1 * L:2 * L]
        g_g = tnh[:, 2 * L:3 * L]
        o_g = sig[:, 3 * L:4 * L]
        c = f_g * c + i_g * g_g
        h = o_g * jnp.tanh(c)
        hs_scratch[pl.ds(t * Bp, Bp), :] = h                   # aligned store
    hn_ref[...] = h                                            # written once
    cn_ref[...] = c

    # ---------- Phase 3: batched post-LSTM head + softmax, fused output ------
    hs = hs_scratch[...]                                       # (T*Bp, L)
    hid = jnp.tanh(
        jnp.dot(hs, w_head_ref[...], preferred_element_type=jnp.float32)
        + b_head_ref[...])                                     # (T*Bp, H2)
    out = (jnp.dot(hid, w_out_ref[...], preferred_element_type=jnp.float32)
           + b_out_ref[...])                                   # (T*Bp, A+1)

    # Softmax over the first A columns; pass the value column through.
    col = lax.broadcasted_iota(jnp.int32, out.shape, 1)
    is_logit = col < A
    masked = jnp.where(is_logit, out, -jnp.inf)
    m = jnp.max(masked, axis=-1, keepdims=True)
    e = jnp.exp(masked - m)                                    # value col -> 0
    denom = jnp.sum(e, axis=-1, keepdims=True)
    probs_full = e / denom                                     # exact normalize
    out_ref[...] = jnp.where(is_logit, probs_full, out)        # probs | value


def _pad_batch(x, bp, axis):
    pad = bp - x.shape[axis]
    if pad == 0:
        return x
    widths = [(0, 0)] * x.ndim
    widths[axis] = (0, pad)
    return jnp.pad(x, widths)


def cartpole_lstm_forward(obs, prev_action, h0, c0, params):
    T, B, OBS = obs.shape
    A = prev_action.shape[-1]
    L = h0.shape[-1]
    Bp = max(8, ((B + 7) // 8) * 8)          # sublane-aligned batch

    # Pad batch and pre-flatten to (T*Bp, ...) — pure XLA metadata ops.
    obs_p = _pad_batch(obs, Bp, 1).reshape(T * Bp, OBS)
    act_p = _pad_batch(prev_action, Bp, 1).reshape(T * Bp, A)
    h0_p = _pad_batch(h0, Bp, 0)
    c0_p = _pad_batch(c0, Bp, 0)

    out_shape = [
        jax.ShapeDtypeStruct((T * Bp, A + 1), jnp.float32),   # probs | value
        jax.ShapeDtypeStruct((Bp, L), jnp.float32),           # hn
        jax.ShapeDtypeStruct((Bp, L), jnp.float32),           # cn
    ]

    out2d, hn, cn = pl.pallas_call(
        cartpole_lstm_kernel,
        out_shape=out_shape,
        scratch_shapes=[pltpu.VMEM((T * Bp, L), jnp.float32)],  # per-step h_t
    )(obs_p, act_p, h0_p, c0_p,
      params["w_fc"], params["b_fc"],
      params["w_ih_fc"], params["w_ih_act"], params["w_hh"], params["b_lstm"],
      params["w_head"], params["b_head"], params["w_out"], params["b_out"])

    out3d = out2d.reshape(T, Bp, A + 1)[:, :B]
    probs = out3d[..., :A]
    value = out3d[..., A]
    return probs, value, hn[None, :B], cn[None, :B]


def reference_forward(obs, prev_action, h0, c0, p):
    """Pure-JAX reference mirroring the PyTorch module semantics."""
    T, B, OBS = obs.shape
    A = prev_action.shape[-1]
    L = h0.shape[-1]
    fc = jnp.tanh(obs.reshape(T * B, OBS) @ p["w_fc"] + p["b_fc"])
    lstm_in = jnp.concatenate([fc.reshape(T, B, -1), prev_action], axis=-1)
    w_ih = jnp.concatenate([p["w_ih_fc"], p["w_ih_act"]], axis=0)

    def step(carry, xt):
        h, c = carry
        gates = xt @ w_ih + h @ p["w_hh"] + p["b_lstm"][0]
        i = jax.nn.sigmoid(gates[:, 0 * L:1 * L])
        f = jax.nn.sigmoid(gates[:, 1 * L:2 * L])
        g = jnp.tanh(gates[:, 2 * L:3 * L])
        o = jax.nn.sigmoid(gates[:, 3 * L:4 * L])
        c_new = f * c + i * g
        h_new = o * jnp.tanh(c_new)
        return (h_new, c_new), h_new

    (hn, cn), hs = jax.lax.scan(step, (h0, c0), lstm_in)
    hid = jnp.tanh(hs.reshape(T * B, L) @ p["w_head"] + p["b_head"])
    out = hid @ p["w_out"] + p["b_out"]
    probs = jax.nn.softmax(out[:, :A], axis=-1).reshape(T, B, A)
    value = out[:, A].reshape(T, B)
    return probs, value, hn[None], cn[None]


def init_params(key, obs_dim, n_actions, h1, lstm_size, h2):
    # NOTE: when porting real torch.nn.LSTM weights, pass b_lstm = b_ih + b_hh.
    ks = jax.random.split(key, 8)
    s = 0.1
    return {
        "w_fc": s * jax.random.normal(ks[0], (obs_dim, h1), jnp.float32),
        "b_fc": s * jax.random.normal(ks[1], (1, h1), jnp.float32),
        "w_ih_fc": s * jax.random.normal(ks[2], (h1, 4 * lstm_size), jnp.float32),
        "w_ih_act": s * jax.random.normal(ks[3], (n_actions, 4 * lstm_size), jnp.float32),
        "w_hh": s * jax.random.normal(ks[4], (lstm_size, 4 * lstm_size), jnp.float32),
        "b_lstm": s * jax.random.normal(ks[5], (1, 4 * lstm_size), jnp.float32),
        "w_head": s * jax.random.normal(ks[6], (lstm_size, h2), jnp.float32),
        "b_head": jnp.zeros((1, h2), jnp.float32),
        "w_out": s * jax.random.normal(ks[7], (h2, n_actions + 1), jnp.float32),
        "b_out": jnp.zeros((1, n_actions + 1), jnp.float32),
    }


if __name__ == "__main__":
    # CartPole: obs_dim = 4, n_actions = 2; pre/post hidden = 32, lstm = 32.
    # For real workloads grow B (the wrapper already pads to >=8; per-step cost
    # is flat in B up to the MXU LHS-row limit, 128 on v5e / 256 on v6e,v7x).
    T, B, OBS, A, H1, L, H2 = 8, 2, 4, 2, 32, 32, 32

    key = jax.random.PRNGKey(0)
    k_obs, k_act, k_h, k_c, k_par = jax.random.split(key, 5)

    obs = jax.random.normal(k_obs, (T, B, OBS), jnp.float32)
    act_idx = jax.random.randint(k_act, (T, B), 0, A)
    prev_action = jax.nn.one_hot(act_idx, A, dtype=jnp.float32)
    h0 = 0.1 * jax.random.normal(k_h, (B, L), jnp.float32)
    c0 = 0.1 * jax.random.normal(k_c, (B, L), jnp.float32)
    params = init_params(k_par, OBS, A, H1, L, H2)

    probs, value, hn, cn = jax.block_until_ready(
        cartpole_lstm_forward(obs, prev_action, h0, c0, params))

    r_probs, r_value, r_hn, r_cn = jax.block_until_ready(
        reference_forward(obs, prev_action, h0, c0, params))

    assert probs.shape == (T, B, A) and value.shape == (T, B)
    assert hn.shape == (1, B, L) and cn.shape == (1, B, L)
    assert jnp.allclose(probs, r_probs, atol=1e-3, rtol=1e-3)
    assert jnp.allclose(value, r_value, atol=1e-3, rtol=1e-3)
    assert jnp.allclose(hn, r_hn, atol=1e-3, rtol=1e-3)
    assert jnp.allclose(cn, r_cn, atol=1e-3, rtol=1e-3)

    print("KERNEL_OK")
</pallas_src>

<mosaic_0001>
module attributes {stable_mosaic.version = 11 : i64} {
  func.func @cartpole_lstm_kernel(%arg0: memref<64x4xf32, #tpu.memory_space<vmem>>, %arg1: memref<64x2xf32, #tpu.memory_space<vmem>>, %arg2: memref<8x32xf32, #tpu.memory_space<vmem>>, %arg3: memref<8x32xf32, #tpu.memory_space<vmem>>, %arg4: memref<4x32xf32, #tpu.memory_space<vmem>>, %arg5: memref<1x32xf32, #tpu.memory_space<vmem>>, %arg6: memref<32x128xf32, #tpu.memory_space<vmem>>, %arg7: memref<2x128xf32, #tpu.memory_space<vmem>>, %arg8: memref<32x128xf32, #tpu.memory_space<vmem>>, %arg9: memref<1x128xf32, #tpu.memory_space<vmem>>, %arg10: memref<32x32xf32, #tpu.memory_space<vmem>>, %arg11: memref<1x32xf32, #tpu.memory_space<vmem>>, %arg12: memref<32x3xf32, #tpu.memory_space<vmem>>, %arg13: memref<1x3xf32, #tpu.memory_space<vmem>>, %arg14: memref<64x3xf32, #tpu.memory_space<vmem>>, %arg15: memref<8x32xf32, #tpu.memory_space<vmem>>, %arg16: memref<8x32xf32, #tpu.memory_space<vmem>>, %arg17: memref<64x32xf32, #tpu.memory_space<vmem>>) attributes {dimension_semantics = [], scalar_prefetch = 0 : i64, scratch_operands = 1 : i64, tpu.core_type = #tpu.core_type<tc>} {
    %c0 = arith.constant 0 : index
    %c0_0 = arith.constant 0 : index
    %0 = vector.load %arg0[%c0, %c0_0] : memref<64x4xf32, #tpu.memory_space<vmem>>, vector<64x4xf32>
    %c0_1 = arith.constant 0 : index
    %c0_2 = arith.constant 0 : index
    %1 = vector.load %arg4[%c0_1, %c0_2] : memref<4x32xf32, #tpu.memory_space<vmem>>, vector<4x32xf32>
    %cst = arith.constant dense<0.000000e+00> : vector<64x32xf32>
    %2 = tpu.matmul %0, %1, %cst {dimension_numbers = #tpu.dot_dimension_numbers<[1], [0], [0], [1], [0, 0, 1, 1], [], []>} : vector<64x4xf32>, vector<4x32xf32>, vector<64x32xf32> -> vector<64x32xf32>
    %c0_3 = arith.constant 0 : index
    %c0_4 = arith.constant 0 : index
    %3 = vector.load %arg5[%c0_3, %c0_4] : memref<1x32xf32, #tpu.memory_space<vmem>>, vector<1x32xf32>
    %4 = vector.broadcast %3 : vector<1x32xf32> to vector<64x32xf32>
    %5 = arith.addf %2, %4 : vector<64x32xf32>
    %6 = math.tanh %5 : vector<64x32xf32>
    %c0_5 = arith.constant 0 : index
    %c0_6 = arith.constant 0 : index
    %7 = vector.load %arg1[%c0_5, %c0_6] : memref<64x2xf32, #tpu.memory_space<vmem>>, vector<64x2xf32>
    %8 = vector.extract_strided_slice %7 {offsets = [0, 0], sizes = [64, 1], strides = [1, 1]} : vector<64x2xf32> to vector<64x1xf32>
    %c0_7 = arith.constant 0 : index
    %c0_8 = arith.constant 0 : index
    %9 = vector.load %arg7[%c0_7, %c0_8] : memref<2x128xf32, #tpu.memory_space<vmem>>, vector<1x128xf32>
    %10 = vector.broadcast %8 : vector<64x1xf32> to vector<64x128xf32>
    %11 = vector.broadcast %9 : vector<1x128xf32> to vector<64x128xf32>
    %12 = arith.mulf %10, %11 : vector<64x128xf32>
    %13 = vector.extract_strided_slice %7 {offsets = [0, 1], sizes = [64, 1], strides = [1, 1]} : vector<64x2xf32> to vector<64x1xf32>
    %c1 = arith.constant 1 : index
    %c0_9 = arith.constant 0 : index
    %14 = vector.load %arg7[%c1, %c0_9] : memref<2x128xf32, #tpu.memory_space<vmem>>, vector<1x128xf32>
    %15 = vector.broadcast %13 : vector<64x1xf32> to vector<64x128xf32>
    %16 = vector.broadcast %14 : vector<1x128xf32> to vector<64x128xf32>
    %17 = arith.mulf %15, %16 : vector<64x128xf32>
    %18 = arith.addf %12, %17 : vector<64x128xf32>
    %c0_10 = arith.constant 0 : index
    %c0_11 = arith.constant 0 : index
    %19 = vector.load %arg6[%c0_10, %c0_11] : memref<32x128xf32, #tpu.memory_space<vmem>>, vector<32x128xf32>
    %cst_12 = arith.constant dense<0.000000e+00> : vector<64x128xf32>
    %20 = tpu.matmul %6, %19, %cst_12 {dimension_numbers = #tpu.dot_dimension_numbers<[1], [0], [0], [1], [0, 0, 1, 1], [], []>} : vector<64x32xf32>, vector<32x128xf32>, vector<64x128xf32> -> vector<64x128xf32>
    %21 = arith.addf %20, %18 : vector<64x128xf32>
    %c0_13 = arith.constant 0 : index
    %c0_14 = arith.constant 0 : index
    %22 = vector.load %arg9[%c0_13, %c0_14] : memref<1x128xf32, #tpu.memory_space<vmem>>, vector<1x128xf32>
    %23 = vector.broadcast %22 : vector<1x128xf32> to vector<64x128xf32>
    %24 = arith.addf %21, %23 : vector<64x128xf32>
    %c0_15 = arith.constant 0 : index
    %c0_16 = arith.constant 0 : index
    %25 = vector.load %arg2[%c0_15, %c0_16] : memref<8x32xf32, #tpu.memory_space<vmem>>, vector<8x32xf32>
    %c0_17 = arith.constant 0 : index
    %c0_18 = arith.constant 0 : index
    %26 = vector.load %arg3[%c0_17, %c0_18] : memref<8x32xf32, #tpu.memory_space<vmem>>, vector<8x32xf32>
    %c0_19 = arith.constant 0 : index
    %c0_20 = arith.constant 0 : index
    %27 = vector.load %arg8[%c0_19, %c0_20] : memref<32x128xf32, #tpu.memory_space<vmem>>, vector<32x128xf32>
    %28 = vector.extract_strided_slice %24 {offsets = [0, 0], sizes = [8, 128], strides = [1, 1]} : vector<64x128xf32> to vector<8x128xf32>
    %cst_21 = arith.constant dense<0.000000e+00> : vector<8x128xf32>
    %29 = tpu.matmul %25, %27, %cst_21 {dimension_numbers = #tpu.dot_dimension_numbers<[1], [0], [0], [1], [0, 0, 1, 1], [], []>} : vector<8x32xf32>, vector<32x128xf32>, vector<8x128xf32> -> vector<8x128xf32>
    %30 = arith.addf %28, %29 : vector<8x128xf32>
    %31 = arith.negf %30 : vector<8x128xf32>
    %32 = math.exp %31 : vector<8x128xf32>
    %cst_22 = arith.constant 1.000000e+00 : f32
    %33 = vector.broadcast %cst_22 : f32 to vector<8x128xf32>
    %34 = arith.addf %33, %32 : vector<8x128xf32>
    %35 = arith.divf %33, %34 : vector<8x128xf32>
    %36 = math.tanh %30 : vector<8x128xf32>
    %37 = vector.extract_strided_slice %35 {offsets = [0, 0], sizes = [8, 32], strides = [1, 1]} : vector<8x128xf32> to vector<8x32xf32>
    %38 = vector.extract_strided_slice %35 {offsets = [0, 32], sizes = [8, 32], strides = [1, 1]} : vector<8x128xf32> to vector<8x32xf32>
    %39 = vector.extract_strided_slice %36 {offsets = [0, 64], sizes = [8, 32], strides = [1, 1]} : vector<8x128xf32> to vector<8x32xf32>
    %40 = vector.extract_strided_slice %35 {offsets = [0, 96], sizes = [8, 32], strides = [1, 1]} : vector<8x128xf32> to vector<8x32xf32>
    %41 = arith.mulf %38, %26 : vector<8x32xf32>
    %42 = arith.mulf %37, %39 : vector<8x32xf32>
    %43 = arith.addf %41, %42 : vector<8x32xf32>
    %44 = math.tanh %43 : vector<8x32xf32>
    %45 = arith.mulf %40, %44 : vector<8x32xf32>
    %c0_23 = arith.constant 0 : index
    %c0_24 = arith.constant 0 : index
    %46 = vector.load %arg17[%c0_23, %c0_24] : memref<64x32xf32, #tpu.memory_space<vmem>>, vector<8x32xf32>
    tpu.vector_store %arg17[%c0_23, %c0_24], %45 {strides = array<i32>} : memref<64x32xf32, #tpu.memory_space<vmem>>, vector<8x32xf32>,
    %47 = vector.extract_strided_slice %24 {offsets = [8, 0], sizes = [8, 128], strides = [1, 1]} : vector<64x128xf32> to vector<8x128xf32>
    %cst_25 = arith.constant dense<0.000000e+00> : vector<8x128xf32>
    %48 = tpu.matmul %45, %27, %cst_25 {dimension_numbers = #tpu.dot_dimension_numbers<[1], [0], [0], [1], [0, 0, 1, 1], [], []>} : vector<8x32xf32>, vector<32x128xf32>, vector<8x128xf32> -> vector<8x128xf32>
    %49 = arith.addf %47, %48 : vector<8x128xf32>
    %50 = arith.negf %49 : vector<8x128xf32>
    %51 = math.exp %50 : vector<8x128xf32>
    %cst_26 = arith.constant 1.000000e+00 : f32
    %52 = vector.broadcast %cst_26 : f32 to vector<8x128xf32>
    %53 = arith.addf %52, %51 : vector<8x128xf32>
    %54 = arith.divf %52, %53 : vector<8x128xf32>
    %55 = math.tanh %49 : vector<8x128xf32>
    %56 = vector.extract_strided_slice %54 {offsets = [0, 0], sizes = [8, 32], strides = [1, 1]} : vector<8x128xf32> to vector<8x32xf32>
    %57 = vector.extract_strided_slice %54 {offsets = [0, 32], sizes = [8, 32], strides = [1, 1]} : vector<8x128xf32> to vector<8x32xf32>
    %58 = vector.extract_strided_slice %55 {offsets = [0, 64], sizes = [8, 32], strides = [1, 1]} : vector<8x128xf32> to vector<8x32xf32>
    %59 = vector.extract_strided_slice %54 {offsets = [0, 96], sizes = [8, 32], strides = [1, 1]} : vector<8x128xf32> to vector<8x32xf32>
    %60 = arith.mulf %57, %43 : vector<8x32xf32>
    %61 = arith.mulf %56, %58 : vector<8x32xf32>
    %62 = arith.addf %60, %61 : vector<8x32xf32>
    %63 = math.tanh %62 : vector<8x32xf32>
    %64 = arith.mulf %59, %63 : vector<8x32xf32>
    %c8 = arith.constant 8 : index
    %c0_27 = arith.constant 0 : index
    %65 = vector.load %arg17[%c8, %c0_27] : memref<64x32xf32, #tpu.memory_space<vmem>>, vector<8x32xf32>
    tpu.vector_store %arg17[%c8, %c0_27], %64 {strides = array<i32>} : memref<64x32xf32, #tpu.memory_space<vmem>>, vector<8x32xf32>,
    %66 = vector.extract_strided_slice %24 {offsets = [16, 0], sizes = [8, 128], strides = [1, 1]} : vector<64x128xf32> to vector<8x128xf32>
    %cst_28 = arith.constant dense<0.000000e+00> : vector<8x128xf32>
    %67 = tpu.matmul %64, %27, %cst_28 {dimension_numbers = #tpu.dot_dimension_numbers<[1], [0], [0], [1], [0, 0, 1, 1], [], []>} : vector<8x32xf32>, vector<32x128xf32>, vector<8x128xf32> -> vector<8x128xf32>
    %68 = arith.addf %66, %67 : vector<8x128xf32>
    %69 = arith.negf %68 : vector<8x128xf32>
    %70 = math.exp %69 : vector<8x128xf32>
    %cst_29 = arith.constant 1.000000e+00 : f32
    %71 = vector.broadcast %cst_29 : f32 to vector<8x128xf32>
    %72 = arith.addf %71, %70 : vector<8x128xf32>
    %73 = arith.divf %71, %72 : vector<8x128xf32>
    %74 = math.tanh %68 : vector<8x128xf32>
    %75 = vector.extract_strided_slice %73 {offsets = [0, 0], sizes = [8, 32], strides = [1, 1]} : vector<8x128xf32> to vector<8x32xf32>
    %76 = vector.extract_strided_slice %73 {offsets = [0, 32], sizes = [8, 32], strides = [1, 1]} : vector<8x128xf32> to vector<8x32xf32>
    %77 = vector.extract_strided_slice %74 {offsets = [0, 64], sizes = [8, 32], strides = [1, 1]} : vector<8x128xf32> to vector<8x32xf32>
    %78 = vector.extract_strided_slice %73 {offsets = [0, 96], sizes = [8, 32], strides = [1, 1]} : vector<8x128xf32> to vector<8x32xf32>
    %79 = arith.mulf %76, %62 : vector<8x32xf32>
    %80 = arith.mulf %75, %77 : vector<8x32xf32>
    %81 = arith.addf %79, %80 : vector<8x32xf32>
    %82 = math.tanh %81 : vector<8x32xf32>
    %83 = arith.mulf %78, %82 : vector<8x32xf32>
    %c16 = arith.constant 16 : index
    %c0_30 = arith.constant 0 : index
    %84 = vector.load %arg17[%c16, %c0_30] : memref<64x32xf32, #tpu.memory_space<vmem>>, vector<8x32xf32>
    tpu.vector_store %arg17[%c16, %c0_30], %83 {strides = array<i32>} : memref<64x32xf32, #tpu.memory_space<vmem>>, vector<8x32xf32>,
    %85 = vector.extract_strided_slice %24 {offsets = [24, 0], sizes = [8, 128], strides = [1, 1]} : vector<64x128xf32> to vector<8x128xf32>
    %cst_31 = arith.constant dense<0.000000e+00> : vector<8x128xf32>
    %86 = tpu.matmul %83, %27, %cst_31 {dimension_numbers = #tpu.dot_dimension_numbers<[1], [0], [0], [1], [0, 0, 1, 1], [], []>} : vector<8x32xf32>, vector<32x128xf32>, vector<8x128xf32> -> vector<8x128xf32>
    %87 = arith.addf %85, %86 : vector<8x128xf32>
    %88 = arith.negf %87 : vector<8x128xf32>
    %89 = math.exp %88 : vector<8x128xf32>
    %cst_32 = arith.constant 1.000000e+00 : f32
    %90 = vector.broadcast %cst_32 : f32 to vector<8x128xf32>
    %91 = arith.addf %90, %89 : vector<8x128xf32>
    %92 = arith.divf %90, %91 : vector<8x128xf32>
    %93 = math.tanh %87 : vector<8x128xf32>
    %94 = vector.extract_strided_slice %92 {offsets = [0, 0], sizes = [8, 32], strides = [1, 1]} : vector<8x128xf32> to vector<8x32xf32>
    %95 = vector.extract_strided_slice %92 {offsets = [0, 32], sizes = [8, 32], strides = [1, 1]} : vector<8x128xf32> to vector<8x32xf32>
    %96 = vector.extract_strided_slice %93 {offsets = [0, 64], sizes = [8, 32], strides = [1, 1]} : vector<8x128xf32> to vector<8x32xf32>
    %97 = vector.extract_strided_slice %92 {offsets = [0, 96], sizes = [8, 32], strides = [1, 1]} : vector<8x128xf32> to vector<8x32xf32>
    %98 = arith.mulf %95, %81 : vector<8x32xf32>
    %99 = arith.mulf %94, %96 : vector<8x32xf32>
    %100 = arith.addf %98, %99 : vector<8x32xf32>
    %101 = math.tanh %100 : vector<8x32xf32>
    %102 = arith.mulf %97, %101 : vector<8x32xf32>
    %c24 = arith.constant 24 : index
    %c0_33 = arith.constant 0 : index
    %103 = vector.load %arg17[%c24, %c0_33] : memref<64x32xf32, #tpu.memory_space<vmem>>, vector<8x32xf32>
    tpu.vector_store %arg17[%c24, %c0_33], %102 {strides = array<i32>} : memref<64x32xf32, #tpu.memory_space<vmem>>, vector<8x32xf32>,
    %104 = vector.extract_strided_slice %24 {offsets = [32, 0], sizes = [8, 128], strides = [1, 1]} : vector<64x128xf32> to vector<8x128xf32>
    %cst_34 = arith.constant dense<0.000000e+00> : vector<8x128xf32>
    %105 = tpu.matmul %102, %27, %cst_34 {dimension_numbers = #tpu.dot_dimension_numbers<[1], [0], [0], [1], [0, 0, 1, 1], [], []>} : vector<8x32xf32>, vector<32x128xf32>, vector<8x128xf32> -> vector<8x128xf32>
    %106 = arith.addf %104, %105 : vector<8x128xf32>
    %107 = arith.negf %106 : vector<8x128xf32>
    %108 = math.exp %107 : vector<8x128xf32>
    %cst_35 = arith.constant 1.000000e+00 : f32
    %109 = vector.broadcast %cst_35 : f32 to vector<8x128xf32>
    %110 = arith.addf %109, %108 : vector<8x128xf32>
    %111 = arith.divf %109, %110 : vector<8x128xf32>
    %112 = math.tanh %106 : vector<8x128xf32>
    %113 = vector.extract_strided_slice %111 {offsets = [0, 0], sizes = [8, 32], strides = [1, 1]} : vector<8x128xf32> to vector<8x32xf32>
    %114 = vector.extract_strided_slice %111 {offsets = [0, 32], sizes = [8, 32], strides = [1, 1]} : vector<8x128xf32> to vector<8x32xf32>
    %115 = vector.extract_strided_slice %112 {offsets = [0, 64], sizes = [8, 32], strides = [1, 1]} : vector<8x128xf32> to vector<8x32xf32>
    %116 = vector.extract_strided_slice %111 {offsets = [0, 96], sizes = [8, 32], strides = [1, 1]} : vector<8x128xf32> to vector<8x32xf32>
    %117 = arith.mulf %114, %100 : vector<8x32xf32>
    %118 = arith.mulf %113, %115 : vector<8x32xf32>
    %119 = arith.addf %117, %118 : vector<8x32xf32>
    %120 = math.tanh %119 : vector<8x32xf32>
    %121 = arith.mulf %116, %120 : vector<8x32xf32>
    %c32 = arith.constant 32 : index
    %c0_36 = arith.constant 0 : index
    %122 = vector.load %arg17[%c32, %c0_36] : memref<64x32xf32, #tpu.memory_space<vmem>>, vector<8x32xf32>
    tpu.vector_store %arg17[%c32, %c0_36], %121 {strides = array<i32>} : memref<64x32xf32, #tpu.memory_space<vmem>>, vector<8x32xf32>,
    %123 = vector.extract_strided_slice %24 {offsets = [40, 0], sizes = [8, 128], strides = [1, 1]} : vector<64x128xf32> to vector<8x128xf32>
    %cst_37 = arith.constant dense<0.000000e+00> : vector<8x128xf32>
    %124 = tpu.matmul %121, %27, %cst_37 {dimension_numbers = #tpu.dot_dimension_numbers<[1], [0], [0], [1], [0, 0, 1, 1], [], []>} : vector<8x32xf32>, vector<32x128xf32>, vector<8x128xf32> -> vector<8x128xf32>
    %125 = arith.addf %123, %124 : vector<8x128xf32>
    %126 = arith.negf %125 : vector<8x128xf32>
    %127 = math.exp %126 : vector<8x128xf32>
    %cst_38 = arith.constant 1.000000e+00 : f32
    %128 = vector.broadcast %cst_38 : f32 to vector<8x128xf32>
    %129 = arith.addf %128, %127 : vector<8x128xf32>
    %130 = arith.divf %128, %129 : vector<8x128xf32>
    %131 = math.tanh %125 : vector<8x128xf32>
    %132 = vector.extract_strided_slice %130 {offsets = [0, 0], sizes = [8, 32], strides = [1, 1]} : vector<8x128xf32> to vector<8x32xf32>
    %133 = vector.extract_strided_slice %130 {offsets = [0, 32], sizes = [8, 32], strides = [1, 1]} : vector<8x128xf32> to vector<8x32xf32>
    %134 = vector.extract_strided_slice %131 {offsets = [0, 64], sizes = [8, 32], strides = [1, 1]} : vector<8x128xf32> to vector<8x32xf32>
    %135 = vector.extract_strided_slice %130 {offsets = [0, 96], sizes = [8, 32], strides = [1, 1]} : vector<8x128xf32> to vector<8x32xf32>
    %136 = arith.mulf %133, %119 : vector<8x32xf32>
    %137 = arith.mulf %132, %134 : vector<8x32xf32>
    %138 = arith.addf %136, %137 : vector<8x32xf32>
    %139 = math.tanh %138 : vector<8x32xf32>
    %140 = arith.mulf %135, %139 : vector<8x32xf32>
    %c40 = arith.constant 40 : index
    %c0_39 = arith.constant 0 : index
    %141 = vector.load %arg17[%c40, %c0_39] : memref<64x32xf32, #tpu.memory_space<vmem>>, vector<8x32xf32>
    tpu.vector_store %arg17[%c40, %c0_39], %140 {strides = array<i32>} : memref<64x32xf32, #tpu.memory_space<vmem>>, vector<8x32xf32>,
    %142 = vector.extract_strided_slice %24 {offsets = [48, 0], sizes = [8, 128], strides = [1, 1]} : vector<64x128xf32> to vector<8x128xf32>
    %cst_40 = arith.constant dense<0.000000e+00> : vector<8x128xf32>
    %143 = tpu.matmul %140, %27, %cst_40 {dimension_numbers = #tpu.dot_dimension_numbers<[1], [0], [0], [1], [0, 0, 1, 1], [], []>} : vector<8x32xf32>, vector<32x128xf32>, vector<8x128xf32> -> vector<8x128xf32>
    %144 = arith.addf %142, %143 : vector<8x128xf32>
    %145 = arith.negf %144 : vector<8x128xf32>
    %146 = math.exp %145 : vector<8x128xf32>
    %cst_41 = arith.constant 1.000000e+00 : f32
    %147 = vector.broadcast %cst_41 : f32 to vector<8x128xf32>
    %148 = arith.addf %147, %146 : vector<8x128xf32>
    %149 = arith.divf %147, %148 : vector<8x128xf32>
    %150 = math.tanh %144 : vector<8x128xf32>
    %151 = vector.extract_strided_slice %149 {offsets = [0, 0], sizes = [8, 32], strides = [1, 1]} : vector<8x128xf32> to vector<8x32xf32>
    %152 = vector.extract_strided_slice %149 {offsets = [0, 32], sizes = [8, 32], strides = [1, 1]} : vector<8x128xf32> to vector<8x32xf32>
    %153 = vector.extract_strided_slice %150 {offsets = [0, 64], sizes = [8, 32], strides = [1, 1]} : vector<8x128xf32> to vector<8x32xf32>
    %154 = vector.extract_strided_slice %149 {offsets = [0, 96], sizes = [8, 32], strides = [1, 1]} : vector<8x128xf32> to vector<8x32xf32>
    %155 = arith.mulf %152, %138 : vector<8x32xf32>
    %156 = arith.mulf %151, %153 : vector<8x32xf32>
    %157 = arith.addf %155, %156 : vector<8x32xf32>
    %158 = math.tanh %157 : vector<8x32xf32>
    %159 = arith.mulf %154, %158 : vector<8x32xf32>
    %c48 = arith.constant 48 : index
    %c0_42 = arith.constant 0 : index
    %160 = vector.load %arg17[%c48, %c0_42] : memref<64x32xf32, #tpu.memory_space<vmem>>, vector<8x32xf32>
    tpu.vector_store %arg17[%c48, %c0_42], %159 {strides = array<i32>} : memref<64x32xf32, #tpu.memory_space<vmem>>, vector<8x32xf32>,
    %161 = vector.extract_strided_slice %24 {offsets = [56, 0], sizes = [8, 128], strides = [1, 1]} : vector<64x128xf32> to vector<8x128xf32>
    %cst_43 = arith.constant dense<0.000000e+00> : vector<8x128xf32>
    %162 = tpu.matmul %159, %27, %cst_43 {dimension_numbers = #tpu.dot_dimension_numbers<[1], [0], [0], [1], [0, 0, 1, 1], [], []>} : vector<8x32xf32>, vector<32x128xf32>, vector<8x128xf32> -> vector<8x128xf32>
    %163 = arith.addf %161, %162 : vector<8x128xf32>
    %164 = arith.negf %163 : vector<8x128xf32>
    %165 = math.exp %164 : vector<8x128xf32>
    %cst_44 = arith.constant 1.000000e+00 : f32
    %166 = vector.broadcast %cst_44 : f32 to vector<8x128xf32>
    %167 = arith.addf %166, %165 : vector<8x128xf32>
    %168 = arith.divf %166, %167 : vector<8x128xf32>
    %169 = math.tanh %163 : vector<8x128xf32>
    %170 = vector.extract_strided_slice %168 {offsets = [0, 0], sizes = [8, 32], strides = [1, 1]} : vector<8x128xf32> to vector<8x32xf32>
    %171 = vector.extract_strided_slice %168 {offsets = [0, 32], sizes = [8, 32], strides = [1, 1]} : vector<8x128xf32> to vector<8x32xf32>
    %172 = vector.extract_strided_slice %169 {offsets = [0, 64], sizes = [8, 32], strides = [1, 1]} : vector<8x128xf32> to vector<8x32xf32>
    %173 = vector.extract_strided_slice %168 {offsets = [0, 96], sizes = [8, 32], strides = [1, 1]} : vector<8x128xf32> to vector<8x32xf32>
    %174 = arith.mulf %171, %157 : vector<8x32xf32>
    %175 = arith.mulf %170, %172 : vector<8x32xf32>
    %176 = arith.addf %174, %175 : vector<8x32xf32>
    %177 = math.tanh %176 : vector<8x32xf32>
    %178 = arith.mulf %173, %177 : vector<8x32xf32>
    %c56 = arith.constant 56 : index
    %c0_45 = arith.constant 0 : index
    %179 = vector.load %arg17[%c56, %c0_45] : memref<64x32xf32, #tpu.memory_space<vmem>>, vector<8x32xf32>
    tpu.vector_store %arg17[%c56, %c0_45], %178 {strides = array<i32>} : memref<64x32xf32, #tpu.memory_space<vmem>>, vector<8x32xf32>,
    %c0_46 = arith.constant 0 : index
    %c0_47 = arith.constant 0 : index
    %180 = vector.load %arg15[%c0_46, %c0_47] : memref<8x32xf32, #tpu.memory_space<vmem>>, vector<8x32xf32>
    tpu.vector_store %arg15[%c0_46, %c0_47], %178 {strides = array<i32>} : memref<8x32xf32, #tpu.memory_space<vmem>>, vector<8x32xf32>,
    %c0_48 = arith.constant 0 : index
    %c0_49 = arith.constant 0 : index
    %181 = vector.load %arg16[%c0_48, %c0_49] : memref<8x32xf32, #tpu.memory_space<vmem>>, vector<8x32xf32>
    tpu.vector_store %arg16[%c0_48, %c0_49], %176 {strides = array<i32>} : memref<8x32xf32, #tpu.memory_space<vmem>>, vector<8x32xf32>,
    %c0_50 = arith.constant 0 : index
    %c0_51 = arith.constant 0 : index
    %182 = vector.load %arg17[%c0_50, %c0_51] : memref<64x32xf32, #tpu.memory_space<vmem>>, vector<64x32xf32>
    %c0_52 = arith.constant 0 : index
    %c0_53 = arith.constant 0 : index
    %183 = vector.load %arg10[%c0_52, %c0_53] : memref<32x32xf32, #tpu.memory_space<vmem>>, vector<32x32xf32>
    %cst_54 = arith.constant dense<0.000000e+00> : vector<64x32xf32>
    %184 = tpu.matmul %182, %183, %cst_54 {dimension_numbers = #tpu.dot_dimension_numbers<[1], [0], [0], [1], [0, 0, 1, 1], [], []>} : vector<64x32xf32>, vector<32x32xf32>, vector<64x32xf32> -> vector<64x32xf32>
    %c0_55 = arith.constant 0 : index
    %c0_56 = arith.constant 0 : index
    %185 = vector.load %arg11[%c0_55, %c0_56] : memref<1x32xf32, #tpu.memory_space<vmem>>, vector<1x32xf32>
    %186 = vector.broadcast %185 : vector<1x32xf32> to vector<64x32xf32>
    %187 = arith.addf %184, %186 : vector<64x32xf32>
    %188 = math.tanh %187 : vector<64x32xf32>
    %c0_57 = arith.constant 0 : index
    %c0_58 = arith.constant 0 : index
    %189 = vector.load %arg12[%c0_57, %c0_58] : memref<32x3xf32, #tpu.memory_space<vmem>>, vector<32x3xf32>
    %cst_59 = arith.constant dense<0.000000e+00> : vector<64x3xf32>
    %190 = tpu.matmul %188, %189, %cst_59 {dimension_numbers = #tpu.dot_dimension_numbers<[1], [0], [0], [1], [0, 0, 1, 1], [], []>} : vector<64x32xf32>, vector<32x3xf32>, vector<64x3xf32> -> vector<64x3xf32>
    %c0_60 = arith.constant 0 : index
    %c0_61 = arith.constant 0 : index
    %191 = vector.load %arg13[%c0_60, %c0_61] : memref<1x3xf32, #tpu.memory_space<vmem>>, vector<1x3xf32>
    %192 = vector.broadcast %191 : vector<1x3xf32> to vector<64x3xf32>
    %193 = arith.addf %190, %192 : vector<64x3xf32>
    %194 = tpu.iota {dimensions = array<i32: 1>} : vector<64x3xi32>
    %c2_i32 = arith.constant 2 : i32
    %195 = vector.broadcast %c2_i32 : i32 to vector<64x3xi32>
    %196 = arith.cmpi slt, %194, %195 : vector<64x3xi32>
    %cst_62 = arith.constant 0xFF800000 : f32
    %197 = vector.broadcast %cst_62 : f32 to vector<64x3xf32>
    %198 = arith.select %196, %193, %197 : vector<64x3xi1>, vector<64x3xf32>
    %cst_63 = arith.constant dense<0xFF800000> : vector<64xf32>
    %199 = vector.multi_reduction <maximumf>, %198, %cst_63 [1] : vector<64x3xf32> to vector<64xf32>
    %200 = vector.shape_cast %199 : vector<64xf32> to vector<64x1xf32>
    %201 = vector.broadcast %200 : vector<64x1xf32> to vector<64x3xf32>
    %202 = arith.subf %198, %201 : vector<64x3xf32>
    %203 = math.exp %202 : vector<64x3xf32>
    %cst_64 = arith.constant dense<0.000000e+00> : vector<64xf32>
    %204 = vector.multi_reduction <add>, %203, %cst_64 [1] : vector<64x3xf32> to vector<64xf32>
    %205 = vector.shape_cast %204 : vector<64xf32> to vector<64x1xf32>
    %206 = vector.broadcast %205 : vector<64x1xf32> to vector<64x3xf32>
    %207 = arith.divf %203, %206 : vector<64x3xf32>
    %208 = arith.select %196, %207, %193 : vector<64x3xi1>, vector<64x3xf32>
    %c0_65 = arith.constant 0 : index
    %c0_66 = arith.constant 0 : index
    %209 = vector.load %arg14[%c0_65, %c0_66] : memref<64x3xf32, #tpu.memory_space<vmem>>, vector<64x3xf32>
    tpu.vector_store %arg14[%c0_65, %c0_66], %208 {strides = array<i32>} : memref<64x3xf32, #tpu.memory_space<vmem>>, vector<64x3xf32>,
    return
  }
}

</mosaic_0001>

<llo_original>
// kernel: tpu_custom_call.1
$region0: #{tpu_custom_call.1}
  #allocation0 [shape = 'u32[]', space=smem, size = 0x4, offset = 0x4, fixed_abs, tag = 'smem constant byte address 0x4 - core index']
  #allocation1 [shape = 'u32[144,128]{1,0:T(1,128)}', space=vmem, size = 0x12000, scoped, tag = 'internal scratch']
  #allocation2 [shape = 'f32[64,32]{1,0:T(8,128)}', space=vmem, size = 0x8000, scoped, tag = 'scratch operand']
  %s0 = inlined_call_operand.vmem [shape: f32[64,4], index: 0, kind: input, shape index: {}]
  %s1 = inlined_call_operand.vmem [shape: f32[64,2], index: 1, kind: input, shape index: {}]
  %s2 = inlined_call_operand.vmem [shape: f32[8,32], index: 2, kind: input, shape index: {}]
  %s3 = inlined_call_operand.vmem [shape: f32[8,32], index: 3, kind: input, shape index: {}]
  %s4 = inlined_call_operand.vmem [shape: f32[4,32], index: 4, kind: input, shape index: {}]
  %s5 = inlined_call_operand.vmem [shape: f32[1,32], index: 5, kind: input, shape index: {}]
  %s6 = inlined_call_operand.vmem [shape: f32[32,128], index: 6, kind: input, shape index: {}]
  %s7 = inlined_call_operand.vmem [shape: f32[2,128], index: 7, kind: input, shape index: {}]
  %s8 = inlined_call_operand.vmem [shape: f32[32,128], index: 8, kind: input, shape index: {}]
  %s9 = inlined_call_operand.vmem [shape: f32[1,128], index: 9, kind: input, shape index: {}]
  %s10 = inlined_call_operand.vmem [shape: f32[32,32], index: 10, kind: input, shape index: {}]
  %s11 = inlined_call_operand.vmem [shape: f32[1,32], index: 11, kind: input, shape index: {}]
  %s12 = inlined_call_operand.vmem [shape: f32[32,3], index: 12, kind: input, shape index: {}]
  %s13 = inlined_call_operand.vmem [shape: f32[1,3], index: 13, kind: input, shape index: {}]
  %s14 = inlined_call_operand.vmem [shape: f32[64,3], index: 14, kind: output, shape index: {0}]
  %s15 = inlined_call_operand.hbm [shape: f32[8,32], index: 15, kind: output, shape index: {1}]
  %s16 = inlined_call_operand.hbm [shape: f32[8,32], index: 16, kind: output, shape index: {2}]
  %17 = xla_tuple %s14, %s15, %s16
  %s18 = sld [smem:[#allocation0]]
  $region82: #{tpu_custom_call.1} parent=0
    _
  %s20 = ssub.s32 1, %s18
  %s21 = scalar_select 0, %s20, %s18
  $region1: #{tpu_custom_call.1} parent=0
    #allocation3 [shape = 'u8[4096]{0}', space=vmem, size = 0x1000, scoped, tag = 'output window, operand 1, single buffered']
    #allocation4 [shape = 's32[1]{0}', space=sflag, size = 0x4, scoped, tag = 'scoped memory for tpu_custom_call.1']
    #allocation5 [shape = 'u8[4096]{0}', space=vmem, size = 0x1000, scoped, tag = 'output window, operand 2, single buffered']
    #allocation6 [shape = 's32[1]{0}', space=sflag, size = 0x4, scoped, tag = 'scoped memory for tpu_custom_call.1']
    %22 = vsyncpa [#allocation4], 0
    %23 = vsyncpa [#allocation6], 0
    // Predicated region
    $region2: #{tpu_custom_call.1} parent=1 // pred_check
      _
    $region3: #{tpu_custom_call.1} parent=1 // pred_check_branch
      %25 = sbr.rel (0) target = $region5
    $region4: #{tpu_custom_call.1} parent=1 // pred_region
      _
    $region5: #{tpu_custom_call.1} parent=1 // pred_fallthru
      _
    // Predicated region
    $region6: #{tpu_custom_call.1} parent=1 // pred_check
      _
    $region7: #{tpu_custom_call.1} parent=1 // pred_check_branch
      %27 = sbr.rel (0) target = $region9
    $region8: #{tpu_custom_call.1} parent=1 // pred_region
      _
    $region9: #{tpu_custom_call.1} parent=1 // pred_fallthru
      _
    // Predicated region
    $region10: #{tpu_custom_call.1} parent=1 // pred_check
      _
    $region11: #{tpu_custom_call.1} parent=1 // pred_check_branch
      %29 = sbr.rel (0) target = $region13
    $region12: #{tpu_custom_call.1} parent=1 // pred_region
      _
    $region13: #{tpu_custom_call.1} parent=1 // pred_fallthru
      _
    // Predicated region
    $region14: #{tpu_custom_call.1} parent=1 // pred_check
      _
    $region15: #{tpu_custom_call.1} parent=1 // pred_check_branch
      %31 = sbr.rel (0) target = $region17
    $region16: #{tpu_custom_call.1} parent=1 // pred_region
      _
    $region17: #{tpu_custom_call.1} parent=1 // pred_fallthru
      _
    // Predicated region
    $region18: #{tpu_custom_call.1} parent=1 // pred_check
      _
    $region19: #{tpu_custom_call.1} parent=1 // pred_check_branch
      %33 = sbr.rel (0) target = $region21
    $region20: #{tpu_custom_call.1} parent=1 // pred_region
      _
    $region21: #{tpu_custom_call.1} parent=1 // pred_fallthru
      _
    // Predicated region
    $region22: #{tpu_custom_call.1} parent=1 // pred_check
      _
    $region23: #{tpu_custom_call.1} parent=1 // pred_check_branch
      %35 = sbr.rel (0) target = $region25
    $region24: #{tpu_custom_call.1} parent=1 // pred_region
      _
    $region25: #{tpu_custom_call.1} parent=1 // pred_fallthru
      _
    // Predicated region
    $region26: #{tpu_custom_call.1} parent=1 // pred_check
      _
    $region27: #{tpu_custom_call.1} parent=1 // pred_check_branch
      %37 = sbr.rel (0) target = $region29
    $region28: #{tpu_custom_call.1} parent=1 // pred_region
      _
    $region29: #{tpu_custom_call.1} parent=1 // pred_fallthru
      _
    // Predicated region
    $region30: #{tpu_custom_call.1} parent=1 // pred_check
      _
    $region31: #{tpu_custom_call.1} parent=1 // pred_check_branch
      %39 = sbr.rel (0) target = $region33
    $region32: #{tpu_custom_call.1} parent=1 // pred_region
      _
    $region33: #{tpu_custom_call.1} parent=1 // pred_fallthru
      _
    // Predicated region
    $region34: #{tpu_custom_call.1} parent=1 // pred_check
      _
    $region35: #{tpu_custom_call.1} parent=1 // pred_check_branch
      %41 = sbr.rel (0) target = $region37
    $region36: #{tpu_custom_call.1} parent=1 // pred_region
      _
    $region37: #{tpu_custom_call.1} parent=1 // pred_fallthru
      _
    // Predicated region
    $region38: #{tpu_custom_call.1} parent=1 // pred_check
      _
    $region39: #{tpu_custom_call.1} parent=1 // pred_check_branch
      %43 = sbr.rel (0) target = $region41
    $region40: #{tpu_custom_call.1} parent=1 // pred_region
      _
    $region41: #{tpu_custom_call.1} parent=1 // pred_fallthru
      _
    // Predicated region
    $region42: #{tpu_custom_call.1} parent=1 // pred_check
      _
    $region43: #{tpu_custom_call.1} parent=1 // pred_check_branch
      %45 = sbr.rel (0) target = $region45
    $region44: #{tpu_custom_call.1} parent=1 // pred_region
      _
    $region45: #{tpu_custom_call.1} parent=1 // pred_fallthru
      _
    // Predicated region
    $region46: #{tpu_custom_call.1} parent=1 // pred_check
      _
    $region47: #{tpu_custom_call.1} parent=1 // pred_check_branch
      %47 = sbr.rel (0) target = $region49
    $region48: #{tpu_custom_call.1} parent=1 // pred_region
      _
    $region49: #{tpu_custom_call.1} parent=1 // pred_fallthru
      _
    // Predicated region
    $region50: #{tpu_custom_call.1} parent=1 // pred_check
      _
    $region51: #{tpu_custom_call.1} parent=1 // pred_check_branch
      %49 = sbr.rel (0) target = $region53
    $region52: #{tpu_custom_call.1} parent=1 // pred_region
      _
    $region53: #{tpu_custom_call.1} parent=1 // pred_fallthru
      _
    // Predicated region
    $region54: #{tpu_custom_call.1} parent=1 // pred_check
      _
    $region55: #{tpu_custom_call.1} parent=1 // pred_check_branch
      %51 = sbr.rel (0) target = $region57
    $region56: #{tpu_custom_call.1} parent=1 // pred_region
      _
    $region57: #{tpu_custom_call.1} parent=1 // pred_fallthru
      _
    %v52 = vld [vmem:[%s0] sm:$0xff]
    %v53 = vld [vmem:[%s0 + $0x8] sm:$0xff]
    %v54 = vld [vmem:[%s0 + $0x10] sm:$0xff]
    %v55 = vld [vmem:[%s0 + $0x18] sm:$0xff]
    %v56 = vld [vmem:[%s0 + $0x20] sm:$0xff]
    %v57 = vld [vmem:[%s0 + $0x28] sm:$0xff]
    %v58 = vld [vmem:[%s0 + $0x30] sm:$0xff]
    %v59 = vld [vmem:[%s0 + $0x38] sm:$0xff]
    %v60 = vld [vmem:[%s4] sm:$0xf]
    %v61 = vld [vmem:[%s5] sm:$0x1]
    %v63 = vlaneseq
    %v64 = vshrl.u32 %v63, 7
    %v65 = vsub.s32 0, %v64
    %v66 = vrot.slane %v61, %v65
    %vm68 = vcmask 31744
    %v70 = vsel %vm68, %v52, 0
    %v73 = vsel %vm68, %v53, 0
    %v76 = vsel %vm68, %v54, 0
    %v79 = vsel %vm68, %v55, 0
    %v82 = vsel %vm68, %v56, 0
    %v85 = vsel %vm68, %v57, 0
    %v88 = vsel %vm68, %v58, 0
    %v91 = vsel %vm68, %v59, 0
    %vm93 = vcmask 1043456
    %v95 = vsel %vm93, %v60, 0
    %97 = vmatprep.subr.mxu0 0.0
    %98 = vmatpush1.msra.mxu0 %v95
    %99 = vmatprep.subr.mxu0 0.0
    %100 = vmatpush1.msra.mxu0 0.0
    %101 = vmatprep.subr.mxu0 0.0
    %102 = vmatpush1.msra.mxu0 0.0
    %103 = vmatprep.subr.mxu0 0.0
    %104 = vmatpush1.msra.mxu0 0.0
    %105 = vmatprep.subr.mxu0 0.0
    %106 = vmatpush1.msra.mxu0 0.0
    %107 = vmatprep.subr.mxu0 0.0
    %108 = vmatpush1.msra.mxu0 0.0
    %109 = vmatprep.subr.mxu0 0.0
    %110 = vmatpush1.msra.mxu0 0.0
    %111 = vmatprep.subr.mxu0 0.0
    %112 = vmatpush1.msra.mxu0 0.0
    %113 = vmatprep.subr.mxu0 0.0
    %114 = vmatpush1.msra.mxu0 0.0
    %115 = vmatprep.subr.mxu0 0.0
    %116 = vmatpush1.msra.mxu0 0.0
    %117 = vmatprep.subr.mxu0 0.0
    %118 = vmatpush1.msra.mxu0 0.0
    %119 = vmatprep.subr.mxu0 0.0
    %120 = vmatpush1.msra.mxu0 0.0
    %121 = vmatprep.subr.mxu0 0.0
    %122 = vmatpush1.msra.mxu0 0.0
    %123 = vmatprep.subr.mxu0 0.0
    %124 = vmatpush1.msra.mxu0 0.0
    %125 = vmatprep.subr.mxu0 0.0
    %126 = vmatpush1.msra.mxu0 0.0
    %127 = vmatprep.subr.mxu0 0.0
    %128 = vmatpush1.msra.mxu0 0.0
    %129 = vmatprep.subr.mxu0 0.0
    %130 = vmatpush1.msra.mxu0 0.0
    %131 = vmatprep.subr.mxu0 0.0
    %132 = vmatpush1.msra.mxu0 0.0
    %133 = vmatprep.subr.mxu0 0.0
    %134 = vmatpush1.msra.mxu0 0.0
    %135 = vmatprep.subr.mxu0 0.0
    %136 = vmatpush1.msra.mxu0 0.0
    %137 = vmatprep.subr.mxu0 0.0
    %138 = vmatpush1.msra.mxu0 0.0
    %139 = vmatprep.subr.mxu0 0.0
    %140 = vmatpush1.msra.mxu0 0.0
    %141 = vmatprep.subr.mxu0 0.0
    %142 = vmatpush1.msra.mxu0 0.0
    %143 = vmatprep.subr.mxu0 0.0
    %144 = vmatpush1.msra.mxu0 0.0
    %145 = vmatprep.subr.mxu0 0.0
    %146 = vmatpush1.msra.mxu0 0.0
    %147 = vmatprep.subr.mxu0 0.0
    %148 = vmatpush1.msra.mxu0 0.0
    %149 = vmatprep.subr.mxu0 0.0
    %150 = vmatpush1.msra.mxu0 0.0
    %151 = vmatprep.subr.mxu0 0.0
    %152 = vmatpush1.msra.mxu0 0.0
    %153 = vmatprep.subr.mxu0 0.0
    %154 = vmatpush1.msra.mxu0 0.0
    %155 = vmatprep.subr.mxu0 0.0
    %156 = vmatpush1.msra.mxu0 0.0
    %157 = vmatprep.subr.mxu0 0.0
    %158 = vmatpush1.msra.mxu0 0.0
    %159 = vmatprep.subr.mxu0 0.0
    %160 = vmatpush1.msra.mxu0 0.0
    %161 = vmatprep.mubr.f32.mxu0 0.0
    %162 = vmatmul.mubr.f32.gmra.mrb[0].mxu0 %v70
    %v163 = vpop.f32.mrb[0].mxu0
    %v164 = vadd.f32 %v66, %v163
    %v165 = vpop.f32.mrb[0].mxu0
    %166 = vmatprep.mubr.f32.mxu0 0.0
    %167 = vmatmul.mubr.f32.gmra.mrb[0].mxu0 %v73
    %v168 = vpop.f32.mrb[0].mxu0
    %v169 = vadd.f32 %v66, %v168
    %v170 = vpop.f32.mrb[0].mxu0
    %171 = vmatprep.mubr.f32.mxu0 0.0
    %172 = vmatmul.mubr.f32.gmra.mrb[0].mxu0 %v76
    %v173 = vpop.f32.mrb[0].mxu0
    %v174 = vadd.f32 %v66, %v173
    %v175 = vpop.f32.mrb[0].mxu0
    %176 = vmatprep.mubr.f32.mxu0 0.0
    %177 = vmatmul.mubr.f32.gmra.mrb[0].mxu0 %v79
    %v178 = vpop.f32.mrb[0].mxu0
    %v179 = vadd.f32 %v66, %v178
    %v180 = vpop.f32.mrb[0].mxu0
    %181 = vmatprep.mubr.f32.mxu0 0.0
    %182 = vmatmul.mubr.f32.gmra.mrb[0].mxu0 %v82
    %v183 = vpop.f32.mrb[0].mxu0
    %v184 = vadd.f32 %v66, %v183
    %v185 = vpop.f32.mrb[0].mxu0
    %186 = vmatprep.mubr.f32.mxu0 0.0
    %187 = vmatmul.mubr.f32.gmra.mrb[0].mxu0 %v85
    %v188 = vpop.f32.mrb[0].mxu0
    %v189 = vadd.f32 %v66, %v188
    %v190 = vpop.f32.mrb[0].mxu0
    %191 = vmatprep.mubr.f32.mxu0 0.0
    %192 = vmatmul.mubr.f32.gmra.mrb[0].mxu0 %v88
    %v193 = vpop.f32.mrb[0].mxu0
    %v194 = vadd.f32 %v66, %v193
    %v195 = vpop.f32.mrb[0].mxu0
    %196 = vmatprep.mubr.f32.mxu0 0.0
    %197 = vmatmul.mubr.f32.gmra.mrb[0].mxu0 %v91
    %v198 = vpop.f32.mrb[0].mxu0
    %v199 = vadd.f32 %v66, %v198
    %v200 = vpop.f32.mrb[0].mxu0
    %201 = vdwg.mxu0
    %v202 = vtanh.pop %v164
    %v203 = vtanh.pop %v169
    %v204 = vtanh.pop %v174
    %v205 = vtanh.pop %v179
    %v206 = vtanh.pop %v184
    %v207 = vtanh.pop %v189
    %v208 = vtanh.pop %v194
    %v209 = vtanh.pop %v199
    %v210 = vld [vmem:[%s1] sm:$0xff]
    %v211 = vld [vmem:[%s1 + $0x8] sm:$0xff]
    %v212 = vld [vmem:[%s1 + $0x10] sm:$0xff]
    %v213 = vld [vmem:[%s1 + $0x18] sm:$0xff]
    %v214 = vld [vmem:[%s1 + $0x20] sm:$0xff]
    %v215 = vld [vmem:[%s1 + $0x28] sm:$0xff]
    %v216 = vld [vmem:[%s1 + $0x30] sm:$0xff]
    %v217 = vld [vmem:[%s1 + $0x38] sm:$0xff]
    %v218 = vld [vmem:[%s7] sm:$0x1]
    %220 = vset.pattern.permute.xlu0 0
    %221 = vperm.xlu0 %220, %v210
    %v222 = vpop.permute.xlu0 %221
    %225 = vset.pattern.permute.xlu0 0
    %226 = vperm.xlu0 %225, %v211
    %v227 = vpop.permute.xlu0 %226
    %230 = vset.pattern.permute.xlu0 0
    %231 = vperm.xlu0 %230, %v212
    %v232 = vpop.permute.xlu0 %231
    %235 = vset.pattern.permute.xlu0 0
    %236 = vperm.xlu0 %235, %v213
    %v237 = vpop.permute.xlu0 %236
    %240 = vset.pattern.permute.xlu0 0
    %241 = vperm.xlu0 %240, %v214
    %v242 = vpop.permute.xlu0 %241
    %245 = vset.pattern.permute.xlu0 0
    %246 = vperm.xlu0 %245, %v215
    %v247 = vpop.permute.xlu0 %246
    %250 = vset.pattern.permute.xlu0 0
    %251 = vperm.xlu0 %250, %v216
    %v252 = vpop.permute.xlu0 %251
    %255 = vset.pattern.permute.xlu0 0
    %256 = vperm.xlu0 %255, %v217
    %v257 = vpop.permute.xlu0 %256
    %v259 = vlaneseq
    %v260 = vshrl.u32 %v259, 7
    %v261 = vsub.s32 0, %v260
    %v262 = vrot.slane %v218, %v261
    %v263 = vmul.f32 %v222, %v262
    %v264 = vmul.f32 %v227, %v262
    %v265 = vmul.f32 %v232, %v262
    %v266 = vmul.f32 %v237, %v262
    %v267 = vmul.f32 %v242, %v262
    %v268 = vmul.f32 %v247, %v262
    %v269 = vmul.f32 %v252, %v262
    %v270 = vmul.f32 %v257, %v262
    %v271 = vld [vmem:[%s7 + $0x1] sm:$0x1]
    %272 = vset.pattern.permute.xlu0 1
    %273 = vperm.xlu0 %272, %v210
    %v274 = vpop.permute.xlu0 %273
    %276 = vset.pattern.permute.xlu0 1
    %277 = vperm.xlu0 %276, %v211
    %v278 = vpop.permute.xlu0 %277
    %280 = vset.pattern.permute.xlu0 1
    %281 = vperm.xlu0 %280, %v212
    %v282 = vpop.permute.xlu0 %281
    %284 = vset.pattern.permute.xlu0 1
    %285 = vperm.xlu0 %284, %v213
    %v286 = vpop.permute.xlu0 %285
    %288 = vset.pattern.permute.xlu0 1
    %289 = vperm.xlu0 %288, %v214
    %v290 = vpop.permute.xlu0 %289
    %292 = vset.pattern.permute.xlu0 1
    %293 = vperm.xlu0 %292, %v215
    %v294 = vpop.permute.xlu0 %293
    %296 = vset.pattern.permute.xlu0 1
    %297 = vperm.xlu0 %296, %v216
    %v298 = vpop.permute.xlu0 %297
    %300 = vset.pattern.permute.xlu0 1
    %301 = vperm.xlu0 %300, %v217
    %v302 = vpop.permute.xlu0 %301
    %v304 = vlaneseq
    %v305 = vshrl.u32 %v304, 7
    %v306 = vsub.s32 0, %v305
    %v307 = vrot.slane %v271, %v306
    %v308 = vmul.f32 %v274, %v307
    %v309 = vmul.f32 %v278, %v307
    %v310 = vmul.f32 %v282, %v307
    %v311 = vmul.f32 %v286, %v307
    %v312 = vmul.f32 %v290, %v307
    %v313 = vmul.f32 %v294, %v307
    %v314 = vmul.f32 %v298, %v307
    %v315 = vmul.f32 %v302, %v307
    %v316 = vadd.f32 %v263, %v308
    %v317 = vadd.f32 %v264, %v309
    %v318 = vadd.f32 %v265, %v310
    %v319 = vadd.f32 %v266, %v311
    %v320 = vadd.f32 %v267, %v312
    %v321 = vadd.f32 %v268, %v313
    %v322 = vadd.f32 %v269, %v314
    %v323 = vadd.f32 %v270, %v315
    %v324 = vld [vmem:[%s6] sm:$0xff]
    %v325 = vld [vmem:[%s6 + $0x8] sm:$0xff]
    %v326 = vld [vmem:[%s6 + $0x10] sm:$0xff]
    %v327 = vld [vmem:[%s6 + $0x18] sm:$0xff]
    %vm328 = vcmask 261120
    %v330 = vsel %vm328, %v202, 0
    %v333 = vsel %vm328, %v203, 0
    %v336 = vsel %vm328, %v204, 0
    %v339 = vsel %vm328, %v205, 0
    %v342 = vsel %vm328, %v206, 0
    %v345 = vsel %vm328, %v207, 0
    %v348 = vsel %vm328, %v208, 0
    %v351 = vsel %vm328, %v209, 0
    %353 = vmatprep.subr.mxu0 0.0
    %354 = vmatpush1.msra.mxu0 %v324
    %355 = vmatprep.subr.mxu0 0.0
    %356 = vmatpush1.msra.mxu0 %v325
    %357 = vmatprep.subr.mxu0 0.0
    %358 = vmatpush1.msra.mxu0 %v326
    %359 = vmatprep.subr.mxu0 0.0
    %360 = vmatpush1.msra.mxu0 %v327
    %361 = vmatprep.subr.mxu0 0.0
    %362 = vmatpush1.msra.mxu0 0.0
    %363 = vmatprep.subr.mxu0 0.0
    %364 = vmatpush1.msra.mxu0 0.0
    %365 = vmatprep.subr.mxu0 0.0
    %366 = vmatpush1.msra.mxu0 0.0
    %367 = vmatprep.subr.mxu0 0.0
    %368 = vmatpush1.msra.mxu0 0.0
    %369 = vmatprep.subr.mxu0 0.0
    %370 = vmatpush1.msra.mxu0 0.0
    %371 = vmatprep.subr.mxu0 0.0
    %372 = vmatpush1.msra.mxu0 0.0
    %373 = vmatprep.subr.mxu0 0.0
    %374 = vmatpush1.msra.mxu0 0.0
    %375 = vmatprep.subr.mxu0 0.0
    %376 = vmatpush1.msra.mxu0 0.0
    %377 = vmatprep.subr.mxu0 0.0
    %378 = vmatpush1.msra.mxu0 0.0
    %379 = vmatprep.subr.mxu0 0.0
    %380 = vmatpush1.msra.mxu0 0.0
    %381 = vmatprep.subr.mxu0 0.0
    %382 = vmatpush1.msra.mxu0 0.0
    %383 = vmatprep.subr.mxu0 0.0
    %384 = vmatpush1.msra.mxu0 0.0
    %385 = vmatprep.subr.mxu0 0.0
    %386 = vmatpush1.msra.mxu0 0.0
    %387 = vmatprep.subr.mxu0 0.0
    %388 = vmatpush1.msra.mxu0 0.0
    %389 = vmatprep.subr.mxu0 0.0
    %390 = vmatpush1.msra.mxu0 0.0
    %391 = vmatprep.subr.mxu0 0.0
    %392 = vmatpush1.msra.mxu0 0.0
    %393 = vmatprep.subr.mxu0 0.0
    %394 = vmatpush1.msra.mxu0 0.0
    %395 = vmatprep.subr.mxu0 0.0
    %396 = vmatpush1.msra.mxu0 0.0
    %397 = vmatprep.subr.mxu0 0.0
    %398 = vmatpush1.msra.mxu0 0.0
    %399 = vmatprep.subr.mxu0 0.0
    %400 = vmatpush1.msra.mxu0 0.0
    %401 = vmatprep.subr.mxu0 0.0
    %402 = vmatpush1.msra.mxu0 0.0
    %403 = vmatprep.subr.mxu0 0.0
    %404 = vmatpush1.msra.mxu0 0.0
    %405 = vmatprep.subr.mxu0 0.0
    %406 = vmatpush1.msra.mxu0 0.0
    %407 = vmatprep.subr.mxu0 0.0
    %408 = vmatpush1.msra.mxu0 0.0
    %409 = vmatprep.subr.mxu0 0.0
    %410 = vmatpush1.msra.mxu0 0.0
    %411 = vmatprep.subr.mxu0 0.0
    %412 = vmatpush1.msra.mxu0 0.0
    %413 = vmatprep.subr.mxu0 0.0
    %414 = vmatpush1.msra.mxu0 0.0
    %415 = vmatprep.subr.mxu0 0.0
    %416 = vmatpush1.msra.mxu0 0.0
    %417 = vmatprep.mubr.f32.mxu0 0.0
    %418 = vmatmul.mubr.f32.gmra.mrb[0].mxu0 %v330
    %v419 = vpop.f32.mrb[0].mxu0
    %v420 = vadd.f32 %v316, %v419
    %v421 = vpop.f32.mrb[0].mxu0
    %422 = vmatprep.mubr.f32.mxu0 0.0
    %423 = vmatmul.mubr.f32.gmra.mrb[0].mxu0 %v333
    %v424 = vpop.f32.mrb[0].mxu0
    %v425 = vadd.f32 %v317, %v424
    %v426 = vpop.f32.mrb[0].mxu0
    %427 = vmatprep.mubr.f32.mxu0 0.0
    %428 = vmatmul.mubr.f32.gmra.mrb[0].mxu0 %v336
    %v429 = vpop.f32.mrb[0].mxu0
    %v430 = vadd.f32 %v318, %v429
    %v431 = vpop.f32.mrb[0].mxu0
    %432 = vmatprep.mubr.f32.mxu0 0.0
    %433 = vmatmul.mubr.f32.gmra.mrb[0].mxu0 %v339
    %v434 = vpop.f32.mrb[0].mxu0
    %v435 = vadd.f32 %v319, %v434
    %v436 = vpop.f32.mrb[0].mxu0
    %437 = vmatprep.mubr.f32.mxu0 0.0
    %438 = vmatmul.mubr.f32.gmra.mrb[0].mxu0 %v342
    %v439 = vpop.f32.mrb[0].mxu0
    %v440 = vadd.f32 %v320, %v439
    %v441 = vpop.f32.mrb[0].mxu0
    %442 = vmatprep.mubr.f32.mxu0 0.0
    %443 = vmatmul.mubr.f32.gmra.mrb[0].mxu0 %v345
    %v444 = vpop.f32.mrb[0].mxu0
    %v445 = vadd.f32 %v321, %v444
    %v446 = vpop.f32.mrb[0].mxu0
    %447 = vmatprep.mubr.f32.mxu0 0.0
    %448 = vmatmul.mubr.f32.gmra.mrb[0].mxu0 %v348
    %v449 = vpop.f32.mrb[0].mxu0
    %v450 = vadd.f32 %v322, %v449
    %v451 = vpop.f32.mrb[0].mxu0
    %452 = vmatprep.mubr.f32.mxu0 0.0
    %453 = vmatmul.mubr.f32.gmra.mrb[0].mxu0 %v351
    %v454 = vpop.f32.mrb[0].mxu0
    %v455 = vadd.f32 %v323, %v454
    %v456 = vpop.f32.mrb[0].mxu0
    %457 = vdwg.mxu0
    %v458 = vld [vmem:[%s9] sm:$0x1]
    %v460 = vlaneseq
    %v461 = vshrl.u32 %v460, 7
    %v462 = vsub.s32 0, %v461
    %v463 = vrot.slane %v458, %v462
    %v465 = vadd.f32 %v420, %v463
    %v466 = vadd.f32 %v425, %v463
    %v467 = vadd.f32 %v430, %v463
    %v468 = vadd.f32 %v435, %v463
    %v469 = vadd.f32 %v440, %v463
    %v470 = vadd.f32 %v445, %v463
    %v471 = vadd.f32 %v450, %v463
    %v472 = vadd.f32 %v455, %v463
    %v473 = vld [vmem:[%s2] sm:$0xff]
    %v474 = vld [vmem:[%s3] sm:$0xff]
    %v475 = vld [vmem:[%s8] sm:$0xff]
    %v476 = vld [vmem:[%s8 + $0x8] sm:$0xff]
    %v477 = vld [vmem:[%s8 + $0x10] sm:$0xff]
    %v478 = vld [vmem:[%s8 + $0x18] sm:$0xff]
    %v480 = vsel %vm328, %v473, 0
    %482 = vmatprep.subr.mxu0 0.0
    %483 = vmatpush1.msra.mxu0 %v475
    %484 = vmatprep.subr.mxu0 0.0
    %485 = vmatpush1.msra.mxu0 %v476
    %486 = vmatprep.subr.mxu0 0.0
    %487 = vmatpush1.msra.mxu0 %v477
    %488 = vmatprep.subr.mxu0 0.0
    %489 = vmatpush1.msra.mxu0 %v478
    %490 = vmatprep.subr.mxu0 0.0
    %491 = vmatpush1.msra.mxu0 0.0
    %492 = vmatprep.subr.mxu0 0.0
    %493 = vmatpush1.msra.mxu0 0.0
    %494 = vmatprep.subr.mxu0 0.0
    %495 = vmatpush1.msra.mxu0 0.0
    %496 = vmatprep.subr.mxu0 0.0
    %497 = vmatpush1.msra.mxu0 0.0
    %498 = vmatprep.subr.mxu0 0.0
    %499 = vmatpush1.msra.mxu0 0.0
    %500 = vmatprep.subr.mxu0 0.0
    %501 = vmatpush1.msra.mxu0 0.0
    %502 = vmatprep.subr.mxu0 0.0
    %503 = vmatpush1.msra.mxu0 0.0
    %504 = vmatprep.subr.mxu0 0.0
    %505 = vmatpush1.msra.mxu0 0.0
    %506 = vmatprep.subr.mxu0 0.0
    %507 = vmatpush1.msra.mxu0 0.0
    %508 = vmatprep.subr.mxu0 0.0
    %509 = vmatpush1.msra.mxu0 0.0
    %510 = vmatprep.subr.mxu0 0.0
    %511 = vmatpush1.msra.mxu0 0.0
    %512 = vmatprep.subr.mxu0 0.0
    %513 = vmatpush1.msra.mxu0 0.0
    %514 = vmatprep.subr.mxu0 0.0
    %515 = vmatpush1.msra.mxu0 0.0
    %516 = vmatprep.subr.mxu0 0.0
    %517 = vmatpush1.msra.mxu0 0.0
    %518 = vmatprep.subr.mxu0 0.0
    %519 = vmatpush1.msra.mxu0 0.0
    %520 = vmatprep.subr.mxu0 0.0
    %521 = vmatpush1.msra.mxu0 0.0
    %522 = vmatprep.subr.mxu0 0.0
    %523 = vmatpush1.msra.mxu0 0.0
    %524 = vmatprep.subr.mxu0 0.0
    %525 = vmatpush1.msra.mxu0 0.0
    %526 = vmatprep.subr.mxu0 0.0
    %527 = vmatpush1.msra.mxu0 0.0
    %528 = vmatprep.subr.mxu0 0.0
    %529 = vmatpush1.msra.mxu0 0.0
    %530 = vmatprep.subr.mxu0 0.0
    %531 = vmatpush1.msra.mxu0 0.0
    %532 = vmatprep.subr.mxu0 0.0
    %533 = vmatpush1.msra.mxu0 0.0
    %534 = vmatprep.subr.mxu0 0.0
    %535 = vmatpush1.msra.mxu0 0.0
    %536 = vmatprep.subr.mxu0 0.0
    %537 = vmatpush1.msra.mxu0 0.0
    %538 = vmatprep.subr.mxu0 0.0
    %539 = vmatpush1.msra.mxu0 0.0
    %540 = vmatprep.subr.mxu0 0.0
    %541 = vmatpush1.msra.mxu0 0.0
    %542 = vmatprep.subr.mxu0 0.0
    %543 = vmatpush1.msra.mxu0 0.0
    %544 = vmatprep.subr.mxu0 0.0
    %545 = vmatpush1.msra.mxu0 0.0
    %546 = vmatprep.mubr.f32.mxu0 0.0
    %547 = vmatmul.mubr.f32.gmra.mrb[0].mxu0 %v480
    %v548 = vpop.f32.mrb[0].mxu0
    %v549 = vadd.f32 0.0, %v548
    %v550 = vpop.f32.mrb[0].mxu0
    %551 = vdwg.mxu0
    %v552 = vadd.f32 %v465, %v549
    %v553 = vxor.u32 %v552, 2147483648
    %v554 = vmul.f32 %v553, 1.442695
    %v555 = vpow.pop %v554
    %v556 = vadd.f32 %v555, 1.0
    %v557 = vrcp.pop %v556
    %v558 = vmul.f32 1.0, %v557
    %v559 = vtanh.pop %v552
    %561 = vrot.lane.b32.xlu0 %v474, 32
    %v562 = vpop.permute.xlu0 %561
    %v564 = vmul.f32 %v558, %v562
    %566 = vrot.lane.b32.xlu0 %v559, 64
    %v567 = vpop.permute.xlu0 %566
    %v569 = vmul.f32 %v558, %v567
    %571 = vrot.lane.b32.xlu0 %v569, 32
    %v572 = vpop.permute.xlu0 %571
    %v574 = vadd.f32 %v564, %v572
    %v575 = vtanh.pop %v574
    %577 = vrot.lane.b32.xlu0 %v575, 64
    %v578 = vpop.permute.xlu0 %577
    %v580 = vmul.f32 %v558, %v578
    %582 = vrot.lane.b32.xlu0 %v580, 32
    %v583 = vpop.permute.xlu0 %582
    %585 = vst.msk [vmem:[#allocation2] sm:$0xff] %vm328, %v583
    %v586 = vsel %vm328, %v583, 0
    %588 = vmatprep.subr.mxu0 0.0
    %589 = vmatpush1.msra.mxu0 %v475
    %590 = vmatprep.subr.mxu0 0.0
    %591 = vmatpush1.msra.mxu0 %v476
    %592 = vmatprep.subr.mxu0 0.0
    %593 = vmatpush1.msra.mxu0 %v477
    %594 = vmatprep.subr.mxu0 0.0
    %595 = vmatpush1.msra.mxu0 %v478
    %596 = vmatprep.subr.mxu0 0.0
    %597 = vmatpush1.msra.mxu0 0.0
    %598 = vmatprep.subr.mxu0 0.0
    %599 = vmatpush1.msra.mxu0 0.0
    %600 = vmatprep.subr.mxu0 0.0
    %601 = vmatpush1.msra.mxu0 0.0
    %602 = vmatprep.subr.mxu0 0.0
    %603 = vmatpush1.msra.mxu0 0.0
    %604 = vmatprep.subr.mxu0 0.0
    %605 = vmatpush1.msra.mxu0 0.0
    %606 = vmatprep.subr.mxu0 0.0
    %607 = vmatpush1.msra.mxu0 0.0
    %608 = vmatprep.subr.mxu0 0.0
    %609 = vmatpush1.msra.mxu0 0.0
    %610 = vmatprep.subr.mxu0 0.0
    %611 = vmatpush1.msra.mxu0 0.0
    %612 = vmatprep.subr.mxu0 0.0
    %613 = vmatpush1.msra.mxu0 0.0
    %614 = vmatprep.subr.mxu0 0.0
    %615 = vmatpush1.msra.mxu0 0.0
    %616 = vmatprep.subr.mxu0 0.0
    %617 = vmatpush1.msra.mxu0 0.0
    %618 = vmatprep.subr.mxu0 0.0
    %619 = vmatpush1.msra.mxu0 0.0
    %620 = vmatprep.subr.mxu0 0.0
    %621 = vmatpush1.msra.mxu0 0.0
    %622 = vmatprep.subr.mxu0 0.0
    %623 = vmatpush1.msra.mxu0 0.0
    %624 = vmatprep.subr.mxu0 0.0
    %625 = vmatpush1.msra.mxu0 0.0
    %626 = vmatprep.subr.mxu0 0.0
    %627 = vmatpush1.msra.mxu0 0.0
    %628 = vmatprep.subr.mxu0 0.0
    %629 = vmatpush1.msra.mxu0 0.0
    %630 = vmatprep.subr.mxu0 0.0
    %631 = vmatpush1.msra.mxu0 0.0
    %632 = vmatprep.subr.mxu0 0.0
    %633 = vmatpush1.msra.mxu0 0.0
    %634 = vmatprep.subr.mxu0 0.0
    %635 = vmatpush1.msra.mxu0 0.0
    %636 = vmatprep.subr.mxu0 0.0
    %637 = vmatpush1.msra.mxu0 0.0
    %638 = vmatprep.subr.mxu0 0.0
    %639 = vmatpush1.msra.mxu0 0.0
    %640 = vmatprep.subr.mxu0 0.0
    %641 = vmatpush1.msra.mxu0 0.0
    %642 = vmatprep.subr.mxu0 0.0
    %643 = vmatpush1.msra.mxu0 0.0
    %644 = vmatprep.subr.mxu0 0.0
    %645 = vmatpush1.msra.mxu0 0.0
    %646 = vmatprep.subr.mxu0 0.0
    %647 = vmatpush1.msra.mxu0 0.0
    %648 = vmatprep.subr.mxu0 0.0
    %649 = vmatpush1.msra.mxu0 0.0
    %650 = vmatprep.subr.mxu0 0.0
    %651 = vmatpush1.msra.mxu0 0.0
    %652 = vmatprep.mubr.f32.mxu0 0.0
    %653 = vmatmul.mubr.f32.gmra.mrb[0].mxu0 %v586
    %v654 = vpop.f32.mrb[0].mxu0
    %v655 = vadd.f32 0.0, %v654
    %v656 = vpop.f32.mrb[0].mxu0
    %657 = vdwg.mxu0
    %v658 = vadd.f32 %v466, %v655
    %v659 = vxor.u32 %v658, 2147483648
    %v660 = vmul.f32 %v659, 1.442695
    %v661 = vpow.pop %v660
    %v662 = vadd.f32 %v661, 1.0
    %v663 = vrcp.pop %v662
    %v664 = vmul.f32 1.0, %v663
    %v665 = vtanh.pop %v658
    %v666 = vmul.f32 %v664, %v574
    %668 = vrot.lane.b32.xlu0 %v665, 64
    %v669 = vpop.permute.xlu0 %668
    %v671 = vmul.f32 %v664, %v669
    %673 = vrot.lane.b32.xlu0 %v671, 32
    %v674 = vpop.permute.xlu0 %673
    %v676 = vadd.f32 %v666, %v674
    %v677 = vtanh.pop %v676
    %679 = vrot.lane.b32.xlu0 %v677, 64
    %v680 = vpop.permute.xlu0 %679
    %v682 = vmul.f32 %v664, %v680
    %684 = vrot.lane.b32.xlu0 %v682, 32
    %v685 = vpop.permute.xlu0 %684
    %687 = vst.msk [vmem:[#allocation2 + $0x8] sm:$0xff] %vm328, %v685
    %v688 = vsel %vm328, %v685, 0
    %690 = vmatprep.subr.mxu0 0.0
    %691 = vmatpush1.msra.mxu0 %v475
    %692 = vmatprep.subr.mxu0 0.0
    %693 = vmatpush1.msra.mxu0 %v476
    %694 = vmatprep.subr.mxu0 0.0
    %695 = vmatpush1.msra.mxu0 %v477
    %696 = vmatprep.subr.mxu0 0.0
    %697 = vmatpush1.msra.mxu0 %v478
    %698 = vmatprep.subr.mxu0 0.0
    %699 = vmatpush1.msra.mxu0 0.0
    %700 = vmatprep.subr.mxu0 0.0
    %701 = vmatpush1.msra.mxu0 0.0
    %702 = vmatprep.subr.mxu0 0.0
    %703 = vmatpush1.msra.mxu0 0.0
    %704 = vmatprep.subr.mxu0 0.0
    %705 = vmatpush1.msra.mxu0 0.0
    %706 = vmatprep.subr.mxu0 0.0
    %707 = vmatpush1.msra.mxu0 0.0
    %708 = vmatprep.subr.mxu0 0.0
    %709 = vmatpush1.msra.mxu0 0.0
    %710 = vmatprep.subr.mxu0 0.0
    %711 = vmatpush1.msra.mxu0 0.0
    %712 = vmatprep.subr.mxu0 0.0
    %713 = vmatpush1.msra.mxu0 0.0
    %714 = vmatprep.subr.mxu0 0.0
    %715 = vmatpush1.msra.mxu0 0.0
    %716 = vmatprep.subr.mxu0 0.0
    %717 = vmatpush1.msra.mxu0 0.0
    %718 = vmatprep.subr.mxu0 0.0
    %719 = vmatpush1.msra.mxu0 0.0
    %720 = vmatprep.subr.mxu0 0.0
    %721 = vmatpush1.msra.mxu0 0.0
    %722 = vmatprep.subr.mxu0 0.0
    %723 = vmatpush1.msra.mxu0 0.0
    %724 = vmatprep.subr.mxu0 0.0
    %725 = vmatpush1.msra.mxu0 0.0
    %726 = vmatprep.subr.mxu0 0.0
    %727 = vmatpush1.msra.mxu0 0.0
    %728 = vmatprep.subr.mxu0 0.0
    %729 = vmatpush1.msra.mxu0 0.0
    %730 = vmatprep.subr.mxu0 0.0
    %731 = vmatpush1.msra.mxu0 0.0
    %732 = vmatprep.subr.mxu0 0.0
    %733 = vmatpush1.msra.mxu0 0.0
    %734 = vmatprep.subr.mxu0 0.0
    %735 = vmatpush1.msra.mxu0 0.0
    %736 = vmatprep.subr.mxu0 0.0
    %737 = vmatpush1.msra.mxu0 0.0
    %738 = vmatprep.subr.mxu0 0.0
    %739 = vmatpush1.msra.mxu0 0.0
    %740 = vmatprep.subr.mxu0 0.0
    %741 = vmatpush1.msra.mxu0 0.0
    %742 = vmatprep.subr.mxu0 0.0
    %743 = vmatpush1.msra.mxu0 0.0
    %744 = vmatprep.subr.mxu0 0.0
    %745 = vmatpush1.msra.mxu0 0.0
    %746 = vmatprep.subr.mxu0 0.0
    %747 = vmatpush1.msra.mxu0 0.0
    %748 = vmatprep.subr.mxu0 0.0
    %749 = vmatpush1.msra.mxu0 0.0
    %750 = vmatprep.subr.mxu0 0.0
    %751 = vmatpush1.msra.mxu0 0.0
    %752 = vmatprep.subr.mxu0 0.0
    %753 = vmatpush1.msra.mxu0 0.0
    %754 = vmatprep.mubr.f32.mxu0 0.0
    %755 = vmatmul.mubr.f32.gmra.mrb[0].mxu0 %v688
    %v756 = vpop.f32.mrb[0].mxu0
    %v757 = vadd.f32 0.0, %v756
    %v758 = vpop.f32.mrb[0].mxu0
    %759 = vdwg.mxu0
    %v760 = vadd.f32 %v467, %v757
    %v761 = vxor.u32 %v760, 2147483648
    %v762 = vmul.f32 %v761, 1.442695
    %v763 = vpow.pop %v762
    %v764 = vadd.f32 %v763, 1.0
    %v765 = vrcp.pop %v764
    %v766 = vmul.f32 1.0, %v765
    %v767 = vtanh.pop %v760
    %v768 = vmul.f32 %v766, %v676
    %770 = vrot.lane.b32.xlu0 %v767, 64
    %v771 = vpop.permute.xlu0 %770
    %v773 = vmul.f32 %v766, %v771
    %775 = vrot.lane.b32.xlu0 %v773, 32
    %v776 = vpop.permute.xlu0 %775
    %v778 = vadd.f32 %v768, %v776
    %v779 = vtanh.pop %v778
    %781 = vrot.lane.b32.xlu0 %v779, 64
    %v782 = vpop.permute.xlu0 %781
    %v784 = vmul.f32 %v766, %v782
    %786 = vrot.lane.b32.xlu0 %v784, 32
    %v787 = vpop.permute.xlu0 %786
    %789 = vst.msk [vmem:[#allocation2 + $0x10] sm:$0xff] %vm328, %v787
    %v790 = vsel %vm328, %v787, 0
    %792 = vmatprep.subr.mxu0 0.0
    %793 = vmatpush1.msra.mxu0 %v475
    %794 = vmatprep.subr.mxu0 0.0
    %795 = vmatpush1.msra.mxu0 %v476
    %796 = vmatprep.subr.mxu0 0.0
    %797 = vmatpush1.msra.mxu0 %v477
    %798 = vmatprep.subr.mxu0 0.0
    %799 = vmatpush1.msra.mxu0 %v478
    %800 = vmatprep.subr.mxu0 0.0
    %801 = vmatpush1.msra.mxu0 0.0
    %802 = vmatprep.subr.mxu0 0.0
    %803 = vmatpush1.msra.mxu0 0.0
    %804 = vmatprep.subr.mxu0 0.0
    %805 = vmatpush1.msra.mxu0 0.0
    %806 = vmatprep.subr.mxu0 0.0
    %807 = vmatpush1.msra.mxu0 0.0
    %808 = vmatprep.subr.mxu0 0.0
    %809 = vmatpush1.msra.mxu0 0.0
    %810 = vmatprep.subr.mxu0 0.0
    %811 = vmatpush1.msra.mxu0 0.0
    %812 = vmatprep.subr.mxu0 0.0
    %813 = vmatpush1.msra.mxu0 0.0
    %814 = vmatprep.subr.mxu0 0.0
    %815 = vmatpush1.msra.mxu0 0.0
    %816 = vmatprep.subr.mxu0 0.0
    %817 = vmatpush1.msra.mxu0 0.0
    %818 = vmatprep.subr.mxu0 0.0
    %819 = vmatpush1.msra.mxu0 0.0
    %820 = vmatprep.subr.mxu0 0.0
    %821 = vmatpush1.msra.mxu0 0.0
    %822 = vmatprep.subr.mxu0 0.0
    %823 = vmatpush1.msra.mxu0 0.0
    %824 = vmatprep.subr.mxu0 0.0
    %825 = vmatpush1.msra.mxu0 0.0
    %826 = vmatprep.subr.mxu0 0.0
    %827 = vmatpush1.msra.mxu0 0.0
    %828 = vmatprep.subr.mxu0 0.0
    %829 = vmatpush1.msra.mxu0 0.0
    %830 = vmatprep.subr.mxu0 0.0
    %831 = vmatpush1.msra.mxu0 0.0
    %832 = vmatprep.subr.mxu0 0.0
    %833 = vmatpush1.msra.mxu0 0.0
    %834 = vmatprep.subr.mxu0 0.0
    %835 = vmatpush1.msra.mxu0 0.0
    %836 = vmatprep.subr.mxu0 0.0
    %837 = vmatpush1.msra.mxu0 0.0
    %838 = vmatprep.subr.mxu0 0.0
    %839 = vmatpush1.msra.mxu0 0.0
    %840 = vmatprep.subr.mxu0 0.0
    %841 = vmatpush1.msra.mxu0 0.0
    %842 = vmatprep.subr.mxu0 0.0
    %843 = vmatpush1.msra.mxu0 0.0
    %844 = vmatprep.subr.mxu0 0.0
    %845 = vmatpush1.msra.mxu0 0.0
    %846 = vmatprep.subr.mxu0 0.0
    %847 = vmatpush1.msra.mxu0 0.0
    %848 = vmatprep.subr.mxu0 0.0
    %849 = vmatpush1.msra.mxu0 0.0
    %850 = vmatprep.subr.mxu0 0.0
    %851 = vmatpush1.msra.mxu0 0.0
    %852 = vmatprep.subr.mxu0 0.0
    %853 = vmatpush1.msra.mxu0 0.0
    %854 = vmatprep.subr.mxu0 0.0
    %855 = vmatpush1.msra.mxu0 0.0
    %856 = vmatprep.mubr.f32.mxu0 0.0
    %857 = vmatmul.mubr.f32.gmra.mrb[0].mxu0 %v790
    %v858 = vpop.f32.mrb[0].mxu0
    %v859 = vadd.f32 0.0, %v858
    %v860 = vpop.f32.mrb[0].mxu0
    %861 = vdwg.mxu0
    %v862 = vadd.f32 %v468, %v859
    %v863 = vxor.u32 %v862, 2147483648
    %v864 = vmul.f32 %v863, 1.442695
    %v865 = vpow.pop %v864
    %v866 = vadd.f32 %v865, 1.0
    %v867 = vrcp.pop %v866
    %v868 = vmul.f32 1.0, %v867
    %v869 = vtanh.pop %v862
    %v870 = vmul.f32 %v868, %v778
    %872 = vrot.lane.b32.xlu0 %v869, 64
    %v873 = vpop.permute.xlu0 %872
    %v875 = vmul.f32 %v868, %v873
    %877 = vrot.lane.b32.xlu0 %v875, 32
    %v878 = vpop.permute.xlu0 %877
    %v880 = vadd.f32 %v870, %v878
    %v881 = vtanh.pop %v880
    %883 = vrot.lane.b32.xlu0 %v881, 64
    %v884 = vpop.permute.xlu0 %883
    %v886 = vmul.f32 %v868, %v884
    %888 = vrot.lane.b32.xlu0 %v886, 32
    %v889 = vpop.permute.xlu0 %888
    %891 = vst.msk [vmem:[#allocation2 + $0x18] sm:$0xff] %vm328, %v889
    %v892 = vsel %vm328, %v889, 0
    %894 = vmatprep.subr.mxu0 0.0
    %895 = vmatpush1.msra.mxu0 %v475
    %896 = vmatprep.subr.mxu0 0.0
    %897 = vmatpush1.msra.mxu0 %v476
    %898 = vmatprep.subr.mxu0 0.0
    %899 = vmatpush1.msra.mxu0 %v477
    %900 = vmatprep.subr.mxu0 0.0
    %901 = vmatpush1.msra.mxu0 %v478
    %902 = vmatprep.subr.mxu0 0.0
    %903 = vmatpush1.msra.mxu0 0.0
    %904 = vmatprep.subr.mxu0 0.0
    %905 = vmatpush1.msra.mxu0 0.0
    %906 = vmatprep.subr.mxu0 0.0
    %907 = vmatpush1.msra.mxu0 0.0
    %908 = vmatprep.subr.mxu0 0.0
    %909 = vmatpush1.msra.mxu0 0.0
    %910 = vmatprep.subr.mxu0 0.0
    %911 = vmatpush1.msra.mxu0 0.0
    %912 = vmatprep.subr.mxu0 0.0
    %913 = vmatpush1.msra.mxu0 0.0
    %914 = vmatprep.subr.mxu0 0.0
    %915 = vmatpush1.msra.mxu0 0.0
    %916 = vmatprep.subr.mxu0 0.0
    %917 = vmatpush1.msra.mxu0 0.0
    %918 = vmatprep.subr.mxu0 0.0
    %919 = vmatpush1.msra.mxu0 0.0
    %920 = vmatprep.subr.mxu0 0.0
    %921 = vmatpush1.msra.mxu0 0.0
    %922 = vmatprep.subr.mxu0 0.0
    %923 = vmatpush1.msra.mxu0 0.0
    %924 = vmatprep.subr.mxu0 0.0
    %925 = vmatpush1.msra.mxu0 0.0
    %926 = vmatprep.subr.mxu0 0.0
    %927 = vmatpush1.msra.mxu0 0.0
    %928 = vmatprep.subr.mxu0 0.0
    %929 = vmatpush1.msra.mxu0 0.0
    %930 = vmatprep.subr.mxu0 0.0
    %931 = vmatpush1.msra.mxu0 0.0
    %932 = vmatprep.subr.mxu0 0.0
    %933 = vmatpush1.msra.mxu0 0.0
    %934 = vmatprep.subr.mxu0 0.0
    %935 = vmatpush1.msra.mxu0 0.0
    %936 = vmatprep.subr.mxu0 0.0
    %937 = vmatpush1.msra.mxu0 0.0
    %938 = vmatprep.subr.mxu0 0.0
    %939 = vmatpush1.msra.mxu0 0.0
    %940 = vmatprep.subr.mxu0 0.0
    %941 = vmatpush1.msra.mxu0 0.0
    %942 = vmatprep.subr.mxu0 0.0
    %943 = vmatpush1.msra.mxu0 0.0
    %944 = vmatprep.subr.mxu0 0.0
    %945 = vmatpush1.msra.mxu0 0.0
    %946 = vmatprep.subr.mxu0 0.0
    %947 = vmatpush1.msra.mxu0 0.0
    %948 = vmatprep.subr.mxu0 0.0
    %949 = vmatpush1.msra.mxu0 0.0
    %950 = vmatprep.subr.mxu0 0.0
    %951 = vmatpush1.msra.mxu0 0.0
    %952 = vmatprep.subr.mxu0 0.0
    %953 = vmatpush1.msra.mxu0 0.0
    %954 = vmatprep.subr.mxu0 0.0
    %955 = vmatpush1.msra.mxu0 0.0
    %956 = vmatprep.subr.mxu0 0.0
    %957 = vmatpush1.msra.mxu0 0.0
    %958 = vmatprep.mubr.f32.mxu0 0.0
    %959 = vmatmul.mubr.f32.gmra.mrb[0].mxu0 %v892
    %v960 = vpop.f32.mrb[0].mxu0
    %v961 = vadd.f32 0.0, %v960
    %v962 = vpop.f32.mrb[0].mxu0
    %963 = vdwg.mxu0
    %v964 = vadd.f32 %v469, %v961
    %v965 = vxor.u32 %v964, 2147483648
    %v966 = vmul.f32 %v965, 1.442695
    %v967 = vpow.pop %v966
    %v968 = vadd.f32 %v967, 1.0
    %v969 = vrcp.pop %v968
    %v970 = vmul.f32 1.0, %v969
    %v971 = vtanh.pop %v964
    %v972 = vmul.f32 %v970, %v880
    %974 = vrot.lane.b32.xlu0 %v971, 64
    %v975 = vpop.permute.xlu0 %974
    %v977 = vmul.f32 %v970, %v975
    %979 = vrot.lane.b32.xlu0 %v977, 32
    %v980 = vpop.permute.xlu0 %979
    %v982 = vadd.f32 %v972, %v980
    %v983 = vtanh.pop %v982
    %985 = vrot.lane.b32.xlu0 %v983, 64
    %v986 = vpop.permute.xlu0 %985
    %v988 = vmul.f32 %v970, %v986
    %990 = vrot.lane.b32.xlu0 %v988, 32
    %v991 = vpop.permute.xlu0 %990
    %993 = vst.msk [vmem:[#allocation2 + $0x20] sm:$0xff] %vm328, %v991
    %v994 = vsel %vm328, %v991, 0
    %996 = vmatprep.subr.mxu0 0.0
    %997 = vmatpush1.msra.mxu0 %v475
    %998 = vmatprep.subr.mxu0 0.0
    %999 = vmatpush1.msra.mxu0 %v476
    %1000 = vmatprep.subr.mxu0 0.0
    %1001 = vmatpush1.msra.mxu0 %v477
    %1002 = vmatprep.subr.mxu0 0.0
    %1003 = vmatpush1.msra.mxu0 %v478
    %1004 = vmatprep.subr.mxu0 0.0
    %1005 = vmatpush1.msra.mxu0 0.0
    %1006 = vmatprep.subr.mxu0 0.0
    %1007 = vmatpush1.msra.mxu0 0.0
    %1008 = vmatprep.subr.mxu0 0.0
    %1009 = vmatpush1.msra.mxu0 0.0
    %1010 = vmatprep.subr.mxu0 0.0
    %1011 = vmatpush1.msra.mxu0 0.0
    %1012 = vmatprep.subr.mxu0 0.0
    %1013 = vmatpush1.msra.mxu0 0.0
    %1014 = vmatprep.subr.mxu0 0.0
    %1015 = vmatpush1.msra.mxu0 0.0
    %1016 = vmatprep.subr.mxu0 0.0
    %1017 = vmatpush1.msra.mxu0 0.0
    %1018 = vmatprep.subr.mxu0 0.0
    %1019 = vmatpush1.msra.mxu0 0.0
    %1020 = vmatprep.subr.mxu0 0.0
    %1021 = vmatpush1.msra.mxu0 0.0
    %1022 = vmatprep.subr.mxu0 0.0
    %1023 = vmatpush1.msra.mxu0 0.0
    %1024 = vmatprep.subr.mxu0 0.0
    %1025 = vmatpush1.msra.mxu0 0.0
    %1026 = vmatprep.subr.mxu0 0.0
    %1027 = vmatpush1.msra.mxu0 0.0
    %1028 = vmatprep.subr.mxu0 0.0
    %1029 = vmatpush1.msra.mxu0 0.0
    %1030 = vmatprep.subr.mxu0 0.0
    %1031 = vmatpush1.msra.mxu0 0.0
    %1032 = vmatprep.subr.mxu0 0.0
    %1033 = vmatpush1.msra.mxu0 0.0
    %1034 = vmatprep.subr.mxu0 0.0
    %1035 = vmatpush1.msra.mxu0 0.0
    %1036 = vmatprep.subr.mxu0 0.0
    %1037 = vmatpush1.msra.mxu0 0.0
    %1038 = vmatprep.subr.mxu0 0.0
    %1039 = vmatpush1.msra.mxu0 0.0
    %1040 = vmatprep.subr.mxu0 0.0
    %1041 = vmatpush1.msra.mxu0 0.0
    %1042 = vmatprep.subr.mxu0 0.0
    %1043 = vmatpush1.msra.mxu0 0.0
    %1044 = vmatprep.subr.mxu0 0.0
    %1045 = vmatpush1.msra.mxu0 0.0
    %1046 = vmatprep.subr.mxu0 0.0
    %1047 = vmatpush1.msra.mxu0 0.0
    %1048 = vmatprep.subr.mxu0 0.0
    %1049 = vmatpush1.msra.mxu0 0.0
    %1050 = vmatprep.subr.mxu0 0.0
    %1051 = vmatpush1.msra.mxu0 0.0
    %1052 = vmatprep.subr.mxu0 0.0
    %1053 = vmatpush1.msra.mxu0 0.0
    %1054 = vmatprep.subr.mxu0 0.0
    %1055 = vmatpush1.msra.mxu0 0.0
    %1056 = vmatprep.subr.mxu0 0.0
    %1057 = vmatpush1.msra.mxu0 0.0
    %1058 = vmatprep.subr.mxu0 0.0
    %1059 = vmatpush1.msra.mxu0 0.0
    %1060 = vmatprep.mubr.f32.mxu0 0.0
    %1061 = vmatmul.mubr.f32.gmra.mrb[0].mxu0 %v994
    %v1062 = vpop.f32.mrb[0].mxu0
    %v1063 = vadd.f32 0.0, %v1062
    %v1064 = vpop.f32.mrb[0].mxu0
    %1065 = vdwg.mxu0
    %v1066 = vadd.f32 %v470, %v1063
    %v1067 = vxor.u32 %v1066, 2147483648
    %v1068 = vmul.f32 %v1067, 1.442695
    %v1069 = vpow.pop %v1068
    %v1070 = vadd.f32 %v1069, 1.0
    %v1071 = vrcp.pop %v1070
    %v1072 = vmul.f32 1.0, %v1071
    %v1073 = vtanh.pop %v1066
    %v1074 = vmul.f32 %v1072, %v982
    %1076 = vrot.lane.b32.xlu0 %v1073, 64
    %v1077 = vpop.permute.xlu0 %1076
    %v1079 = vmul.f32 %v1072, %v1077
    %1081 = vrot.lane.b32.xlu0 %v1079, 32
    %v1082 = vpop.permute.xlu0 %1081
    %v1084 = vadd.f32 %v1074, %v1082
    %v1085 = vtanh.pop %v1084
    %1087 = vrot.lane.b32.xlu0 %v1085, 64
    %v1088 = vpop.permute.xlu0 %1087
    %v1090 = vmul.f32 %v1072, %v1088
    %1092 = vrot.lane.b32.xlu0 %v1090, 32
    %v1093 = vpop.permute.xlu0 %1092
    %1095 = vst.msk [vmem:[#allocation2 + $0x28] sm:$0xff] %vm328, %v1093
    %v1096 = vsel %vm328, %v1093, 0
    %1098 = vmatprep.subr.mxu0 0.0
    %1099 = vmatpush1.msra.mxu0 %v475
    %1100 = vmatprep.subr.mxu0 0.0
    %1101 = vmatpush1.msra.mxu0 %v476
    %1102 = vmatprep.subr.mxu0 0.0
    %1103 = vmatpush1.msra.mxu0 %v477
    %1104 = vmatprep.subr.mxu0 0.0
    %1105 = vmatpush1.msra.mxu0 %v478
    %1106 = vmatprep.subr.mxu0 0.0
    %1107 = vmatpush1.msra.mxu0 0.0
    %1108 = vmatprep.subr.mxu0 0.0
    %1109 = vmatpush1.msra.mxu0 0.0
    %1110 = vmatprep.subr.mxu0 0.0
    %1111 = vmatpush1.msra.mxu0 0.0
    %1112 = vmatprep.subr.mxu0 0.0
    %1113 = vmatpush1.msra.mxu0 0.0
    %1114 = vmatprep.subr.mxu0 0.0
    %1115 = vmatpush1.msra.mxu0 0.0
    %1116 = vmatprep.subr.mxu0 0.0
    %1117 = vmatpush1.msra.mxu0 0.0
    %1118 = vmatprep.subr.mxu0 0.0
    %1119 = vmatpush1.msra.mxu0 0.0
    %1120 = vmatprep.subr.mxu0 0.0
    %1121 = vmatpush1.msra.mxu0 0.0
    %1122 = vmatprep.subr.mxu0 0.0
    %1123 = vmatpush1.msra.mxu0 0.0
    %1124 = vmatprep.subr.mxu0 0.0
    %1125 = vmatpush1.msra.mxu0 0.0
    %1126 = vmatprep.subr.mxu0 0.0
    %1127 = vmatpush1.msra.mxu0 0.0
    %1128 = vmatprep.subr.mxu0 0.0
    %1129 = vmatpush1.msra.mxu0 0.0
    %1130 = vmatprep.subr.mxu0 0.0
    %1131 = vmatpush1.msra.mxu0 0.0
    %1132 = vmatprep.subr.mxu0 0.0
    %1133 = vmatpush1.msra.mxu0 0.0
    %1134 = vmatprep.subr.mxu0 0.0
    %1135 = vmatpush1.msra.mxu0 0.0
    %1136 = vmatprep.subr.mxu0 0.0
    %1137 = vmatpush1.msra.mxu0 0.0
    %1138 = vmatprep.subr.mxu0 0.0
    %1139 = vmatpush1.msra.mxu0 0.0
    %1140 = vmatprep.subr.mxu0 0.0
    %1141 = vmatpush1.msra.mxu0 0.0
    %1142 = vmatprep.subr.mxu0 0.0
    %1143 = vmatpush1.msra.mxu0 0.0
    %1144 = vmatprep.subr.mxu0 0.0
    %1145 = vmatpush1.msra.mxu0 0.0
    %1146 = vmatprep.subr.mxu0 0.0
    %1147 = vmatpush1.msra.mxu0 0.0
    %1148 = vmatprep.subr.mxu0 0.0
    %1149 = vmatpush1.msra.mxu0 0.0
    %1150 = vmatprep.subr.mxu0 0.0
    %1151 = vmatpush1.msra.mxu0 0.0
    %1152 = vmatprep.subr.mxu0 0.0
    %1153 = vmatpush1.msra.mxu0 0.0
    %1154 = vmatprep.subr.mxu0 0.0
    %1155 = vmatpush1.msra.mxu0 0.0
    %1156 = vmatprep.subr.mxu0 0.0
    %1157 = vmatpush1.msra.mxu0 0.0
    %1158 = vmatprep.subr.mxu0 0.0
    %1159 = vmatpush1.msra.mxu0 0.0
    %1160 = vmatprep.subr.mxu0 0.0
    %1161 = vmatpush1.msra.mxu0 0.0
    %1162 = vmatprep.mubr.f32.mxu0 0.0
    %1163 = vmatmul.mubr.f32.gmra.mrb[0].mxu0 %v1096
    %v1164 = vpop.f32.mrb[0].mxu0
    %v1165 = vadd.f32 0.0, %v1164
    %v1166 = vpop.f32.mrb[0].mxu0
    %1167 = vdwg.mxu0
    %v1168 = vadd.f32 %v471, %v1165
    %v1169 = vxor.u32 %v1168, 2147483648
    %v1170 = vmul.f32 %v1169, 1.442695
    %v1171 = vpow.pop %v1170
    %v1172 = vadd.f32 %v1171, 1.0
    %v1173 = vrcp.pop %v1172
    %v1174 = vmul.f32 1.0, %v1173
    %v1175 = vtanh.pop %v1168
    %v1176 = vmul.f32 %v1174, %v1084
    %1178 = vrot.lane.b32.xlu0 %v1175, 64
    %v1179 = vpop.permute.xlu0 %1178
    %v1181 = vmul.f32 %v1174, %v1179
    %1183 = vrot.lane.b32.xlu0 %v1181, 32
    %v1184 = vpop.permute.xlu0 %1183
    %v1186 = vadd.f32 %v1176, %v1184
    %v1187 = vtanh.pop %v1186
    %1189 = vrot.lane.b32.xlu0 %v1187, 64
    %v1190 = vpop.permute.xlu0 %1189
    %v1192 = vmul.f32 %v1174, %v1190
    %1194 = vrot.lane.b32.xlu0 %v1192, 32
    %v1195 = vpop.permute.xlu0 %1194
    %1197 = vst.msk [vmem:[#allocation2 + $0x30] sm:$0xff] %vm328, %v1195
    %v1198 = vsel %vm328, %v1195, 0
    %1200 = vmatprep.subr.mxu0 0.0
    %1201 = vmatpush1.msra.mxu0 %v475
    %1202 = vmatprep.subr.mxu0 0.0
    %1203 = vmatpush1.msra.mxu0 %v476
    %1204 = vmatprep.subr.mxu0 0.0
    %1205 = vmatpush1.msra.mxu0 %v477
    %1206 = vmatprep.subr.mxu0 0.0
    %1207 = vmatpush1.msra.mxu0 %v478
    %1208 = vmatprep.subr.mxu0 0.0
    %1209 = vmatpush1.msra.mxu0 0.0
    %1210 = vmatprep.subr.mxu0 0.0
    %1211 = vmatpush1.msra.mxu0 0.0
    %1212 = vmatprep.subr.mxu0 0.0
    %1213 = vmatpush1.msra.mxu0 0.0
    %1214 = vmatprep.subr.mxu0 0.0
    %1215 = vmatpush1.msra.mxu0 0.0
    %1216 = vmatprep.subr.mxu0 0.0
    %1217 = vmatpush1.msra.mxu0 0.0
    %1218 = vmatprep.subr.mxu0 0.0
    %1219 = vmatpush1.msra.mxu0 0.0
    %1220 = vmatprep.subr.mxu0 0.0
    %1221 = vmatpush1.msra.mxu0 0.0
    %1222 = vmatprep.subr.mxu0 0.0
    %1223 = vmatpush1.msra.mxu0 0.0
    %1224 = vmatprep.subr.mxu0 0.0
    %1225 = vmatpush1.msra.mxu0 0.0
    %1226 = vmatprep.subr.mxu0 0.0
    %1227 = vmatpush1.msra.mxu0 0.0
    %1228 = vmatprep.subr.mxu0 0.0
    %1229 = vmatpush1.msra.mxu0 0.0
    %1230 = vmatprep.subr.mxu0 0.0
    %1231 = vmatpush1.msra.mxu0 0.0
    %1232 = vmatprep.subr.mxu0 0.0
    %1233 = vmatpush1.msra.mxu0 0.0
    %1234 = vmatprep.subr.mxu0 0.0
    %1235 = vmatpush1.msra.mxu0 0.0
    %1236 = vmatprep.subr.mxu0 0.0
    %1237 = vmatpush1.msra.mxu0 0.0
    %1238 = vmatprep.subr.mxu0 0.0
    %1239 = vmatpush1.msra.mxu0 0.0
    %1240 = vmatprep.subr.mxu0 0.0
    %1241 = vmatpush1.msra.mxu0 0.0
    %1242 = vmatprep.subr.mxu0 0.0
    %1243 = vmatpush1.msra.mxu0 0.0
    %1244 = vmatprep.subr.mxu0 0.0
    %1245 = vmatpush1.msra.mxu0 0.0
    %1246 = vmatprep.subr.mxu0 0.0
    %1247 = vmatpush1.msra.mxu0 0.0
    %1248 = vmatprep.subr.mxu0 0.0
    %1249 = vmatpush1.msra.mxu0 0.0
    %1250 = vmatprep.subr.mxu0 0.0
    %1251 = vmatpush1.msra.mxu0 0.0
    %1252 = vmatprep.subr.mxu0 0.0
    %1253 = vmatpush1.msra.mxu0 0.0
    %1254 = vmatprep.subr.mxu0 0.0
    %1255 = vmatpush1.msra.mxu0 0.0
    %1256 = vmatprep.subr.mxu0 0.0
    %1257 = vmatpush1.msra.mxu0 0.0
    %1258 = vmatprep.subr.mxu0 0.0
    %1259 = vmatpush1.msra.mxu0 0.0
    %1260 = vmatprep.subr.mxu0 0.0
    %1261 = vmatpush1.msra.mxu0 0.0
    %1262 = vmatprep.subr.mxu0 0.0
    %1263 = vmatpush1.msra.mxu0 0.0
    %1264 = vmatprep.mubr.f32.mxu0 0.0
    %1265 = vmatmul.mubr.f32.gmra.mrb[0].mxu0 %v1198
    %v1266 = vpop.f32.mrb[0].mxu0
    %v1267 = vadd.f32 0.0, %v1266
    %v1268 = vpop.f32.mrb[0].mxu0
    %1269 = vdwg.mxu0
    %v1270 = vadd.f32 %v472, %v1267
    %v1271 = vxor.u32 %v1270, 2147483648
    %v1272 = vmul.f32 %v1271, 1.442695
    %v1273 = vpow.pop %v1272
    %v1274 = vadd.f32 %v1273, 1.0
    %v1275 = vrcp.pop %v1274
    %v1276 = vmul.f32 1.0, %v1275
    %v1277 = vtanh.pop %v1270
    %v1278 = vmul.f32 %v1276, %v1186
    %1280 = vrot.lane.b32.xlu0 %v1277, 64
    %v1281 = vpop.permute.xlu0 %1280
    %v1283 = vmul.f32 %v1276, %v1281
    %1285 = vrot.lane.b32.xlu0 %v1283, 32
    %v1286 = vpop.permute.xlu0 %1285
    %v1288 = vadd.f32 %v1278, %v1286
    %v1289 = vtanh.pop %v1288
    %1291 = vrot.lane.b32.xlu0 %v1289, 64
    %v1292 = vpop.permute.xlu0 %1291
    %v1294 = vmul.f32 %v1276, %v1292
    %1296 = vrot.lane.b32.xlu0 %v1294, 32
    %v1297 = vpop.permute.xlu0 %1296
    %1299 = vst.msk [vmem:[#allocation2 + $0x38] sm:$0xff] %vm328, %v1297
    %1300 = vst.msk [vmem:[#allocation3] sm:$0xff] %vm328, %v1297
    %1302 = vrot.lane.b32.xlu0 %v1288, 96
    %v1303 = vpop.permute.xlu0 %1302
    %1305 = vst.msk [vmem:[#allocation5] sm:$0xff] %vm328, %v1303
    %v1306 = vld [vmem:[#allocation2] sm:$0xff]
    %v1307 = vld [vmem:[#allocation2 + $0x8] sm:$0xff]
    %v1308 = vld [vmem:[#allocation2 + $0x10] sm:$0xff]
    %v1309 = vld [vmem:[#allocation2 + $0x18] sm:$0xff]
    %v1310 = vld [vmem:[#allocation2 + $0x20] sm:$0xff]
    %v1311 = vld [vmem:[#allocation2 + $0x28] sm:$0xff]
    %v1312 = vld [vmem:[#allocation2 + $0x30] sm:$0xff]
    %v1313 = vld [vmem:[#allocation2 + $0x38] sm:$0xff]
    %v1314 = vld [vmem:[%s10] sm:$0xff]
    %v1315 = vld [vmem:[%s10 + $0x8] sm:$0xff]
    %v1316 = vld [vmem:[%s10 + $0x10] sm:$0xff]
    %v1317 = vld [vmem:[%s10 + $0x18] sm:$0xff]
    %v1318 = vld [vmem:[%s11] sm:$0x1]
    %v1320 = vlaneseq
    %v1321 = vshrl.u32 %v1320, 7
    %v1322 = vsub.s32 0, %v1321
    %v1323 = vrot.slane %v1318, %v1322
    %v1326 = vsel %vm328, %v1306, 0
    %v1329 = vsel %vm328, %v1307, 0
    %v1332 = vsel %vm328, %v1308, 0
    %v1335 = vsel %vm328, %v1309, 0
    %v1338 = vsel %vm328, %v1310, 0
    %v1341 = vsel %vm328, %v1311, 0
    %v1344 = vsel %vm328, %v1312, 0
    %v1347 = vsel %vm328, %v1313, 0
    %1349 = vmatprep.subr.mxu0 0.0
    %1350 = vmatpush1.msra.mxu0 %v1314
    %1351 = vmatprep.subr.mxu0 0.0
    %1352 = vmatpush1.msra.mxu0 %v1315
    %1353 = vmatprep.subr.mxu0 0.0
    %1354 = vmatpush1.msra.mxu0 %v1316
    %1355 = vmatprep.subr.mxu0 0.0
    %1356 = vmatpush1.msra.mxu0 %v1317
    %1357 = vmatprep.subr.mxu0 0.0
    %1358 = vmatpush1.msra.mxu0 0.0
    %1359 = vmatprep.subr.mxu0 0.0
    %1360 = vmatpush1.msra.mxu0 0.0
    %1361 = vmatprep.subr.mxu0 0.0
    %1362 = vmatpush1.msra.mxu0 0.0
    %1363 = vmatprep.subr.mxu0 0.0
    %1364 = vmatpush1.msra.mxu0 0.0
    %1365 = vmatprep.subr.mxu0 0.0
    %1366 = vmatpush1.msra.mxu0 0.0
    %1367 = vmatprep.subr.mxu0 0.0
    %1368 = vmatpush1.msra.mxu0 0.0
    %1369 = vmatprep.subr.mxu0 0.0
    %1370 = vmatpush1.msra.mxu0 0.0
    %1371 = vmatprep.subr.mxu0 0.0
    %1372 = vmatpush1.msra.mxu0 0.0
    %1373 = vmatprep.subr.mxu0 0.0
    %1374 = vmatpush1.msra.mxu0 0.0
    %1375 = vmatprep.subr.mxu0 0.0
    %1376 = vmatpush1.msra.mxu0 0.0
    %1377 = vmatprep.subr.mxu0 0.0
    %1378 = vmatpush1.msra.mxu0 0.0
    %1379 = vmatprep.subr.mxu0 0.0
    %1380 = vmatpush1.msra.mxu0 0.0
    %1381 = vmatprep.subr.mxu0 0.0
    %1382 = vmatpush1.msra.mxu0 0.0
    %1383 = vmatprep.subr.mxu0 0.0
    %1384 = vmatpush1.msra.mxu0 0.0
    %1385 = vmatprep.subr.mxu0 0.0
    %1386 = vmatpush1.msra.mxu0 0.0
    %1387 = vmatprep.subr.mxu0 0.0
    %1388 = vmatpush1.msra.mxu0 0.0
    %1389 = vmatprep.subr.mxu0 0.0
    %1390 = vmatpush1.msra.mxu0 0.0
    %1391 = vmatprep.subr.mxu0 0.0
    %1392 = vmatpush1.msra.mxu0 0.0
    %1393 = vmatprep.subr.mxu0 0.0
    %1394 = vmatpush1.msra.mxu0 0.0
    %1395 = vmatprep.subr.mxu0 0.0
    %1396 = vmatpush1.msra.mxu0 0.0
    %1397 = vmatprep.subr.mxu0 0.0
    %1398 = vmatpush1.msra.mxu0 0.0
    %1399 = vmatprep.subr.mxu0 0.0
    %1400 = vmatpush1.msra.mxu0 0.0
    %1401 = vmatprep.subr.mxu0 0.0
    %1402 = vmatpush1.msra.mxu0 0.0
    %1403 = vmatprep.subr.mxu0 0.0
    %1404 = vmatpush1.msra.mxu0 0.0
    %1405 = vmatprep.subr.mxu0 0.0
    %1406 = vmatpush1.msra.mxu0 0.0
    %1407 = vmatprep.subr.mxu0 0.0
    %1408 = vmatpush1.msra.mxu0 0.0
    %1409 = vmatprep.subr.mxu0 0.0
    %1410 = vmatpush1.msra.mxu0 0.0
    %1411 = vmatprep.subr.mxu0 0.0
    %1412 = vmatpush1.msra.mxu0 0.0
    %1413 = vmatprep.mubr.f32.mxu0 0.0
    %1414 = vmatmul.mubr.f32.gmra.mrb[0].mxu0 %v1326
    %v1415 = vpop.f32.mrb[0].mxu0
    %v1416 = vadd.f32 %v1323, %v1415
    %v1417 = vpop.f32.mrb[0].mxu0
    %1418 = vmatprep.mubr.f32.mxu0 0.0
    %1419 = vmatmul.mubr.f32.gmra.mrb[0].mxu0 %v1329
    %v1420 = vpop.f32.mrb[0].mxu0
    %v1421 = vadd.f32 %v1323, %v1420
    %v1422 = vpop.f32.mrb[0].mxu0
    %1423 = vmatprep.mubr.f32.mxu0 0.0
    %1424 = vmatmul.mubr.f32.gmra.mrb[0].mxu0 %v1332
    %v1425 = vpop.f32.mrb[0].mxu0
    %v1426 = vadd.f32 %v1323, %v1425
    %v1427 = vpop.f32.mrb[0].mxu0
    %1428 = vmatprep.mubr.f32.mxu0 0.0
    %1429 = vmatmul.mubr.f32.gmra.mrb[0].mxu0 %v1335
    %v1430 = vpop.f32.mrb[0].mxu0
    %v1431 = vadd.f32 %v1323, %v1430
    %v1432 = vpop.f32.mrb[0].mxu0
    %1433 = vmatprep.mubr.f32.mxu0 0.0
    %1434 = vmatmul.mubr.f32.gmra.mrb[0].mxu0 %v1338
    %v1435 = vpop.f32.mrb[0].mxu0
    %v1436 = vadd.f32 %v1323, %v1435
    %v1437 = vpop.f32.mrb[0].mxu0
    %1438 = vmatprep.mubr.f32.mxu0 0.0
    %1439 = vmatmul.mubr.f32.gmra.mrb[0].mxu0 %v1341
    %v1440 = vpop.f32.mrb[0].mxu0
    %v1441 = vadd.f32 %v1323, %v1440
    %v1442 = vpop.f32.mrb[0].mxu0
    %1443 = vmatprep.mubr.f32.mxu0 0.0
    %1444 = vmatmul.mubr.f32.gmra.mrb[0].mxu0 %v1344
    %v1445 = vpop.f32.mrb[0].mxu0
    %v1446 = vadd.f32 %v1323, %v1445
    %v1447 = vpop.f32.mrb[0].mxu0
    %1448 = vmatprep.mubr.f32.mxu0 0.0
    %1449 = vmatmul.mubr.f32.gmra.mrb[0].mxu0 %v1347
    %v1450 = vpop.f32.mrb[0].mxu0
    %v1451 = vadd.f32 %v1323, %v1450
    %v1452 = vpop.f32.mrb[0].mxu0
    %1453 = vdwg.mxu0
    %v1454 = vtanh.pop %v1416
    %v1455 = vtanh.pop %v1421
    %v1456 = vtanh.pop %v1426
    %v1457 = vtanh.pop %v1431
    %v1458 = vtanh.pop %v1436
    %v1459 = vtanh.pop %v1441
    %v1460 = vtanh.pop %v1446
    %v1461 = vtanh.pop %v1451
    %v1462 = vld [vmem:[%s12] sm:$0xff]
    %v1463 = vld [vmem:[%s12 + $0x8] sm:$0xff]
    %v1464 = vld [vmem:[%s12 + $0x10] sm:$0xff]
    %v1465 = vld [vmem:[%s12 + $0x18] sm:$0xff]
    %v1466 = vld [vmem:[%s13] sm:$0x1]
    %v1468 = vlaneseq
    %v1469 = vshrl.u32 %v1468, 7
    %v1470 = vsub.s32 0, %v1469
    %v1471 = vrot.slane %v1466, %v1470
    %v1474 = vsel %vm328, %v1454, 0
    %v1477 = vsel %vm328, %v1455, 0
    %v1480 = vsel %vm328, %v1456, 0
    %v1483 = vsel %vm328, %v1457, 0
    %v1486 = vsel %vm328, %v1458, 0
    %v1489 = vsel %vm328, %v1459, 0
    %v1492 = vsel %vm328, %v1460, 0
    %v1495 = vsel %vm328, %v1461, 0
    %1497 = vmatprep.subr.mxu0 0.0
    %1498 = vmatpush1.msra.mxu0 %v1462
    %1499 = vmatprep.subr.mxu0 0.0
    %1500 = vmatpush1.msra.mxu0 %v1463
    %1501 = vmatprep.subr.mxu0 0.0
    %1502 = vmatpush1.msra.mxu0 %v1464
    %1503 = vmatprep.subr.mxu0 0.0
    %1504 = vmatpush1.msra.mxu0 %v1465
    %1505 = vmatprep.subr.mxu0 0.0
    %1506 = vmatpush1.msra.mxu0 0.0
    %1507 = vmatprep.subr.mxu0 0.0
    %1508 = vmatpush1.msra.mxu0 0.0
    %1509 = vmatprep.subr.mxu0 0.0
    %1510 = vmatpush1.msra.mxu0 0.0
    %1511 = vmatprep.subr.mxu0 0.0
    %1512 = vmatpush1.msra.mxu0 0.0
    %1513 = vmatprep.subr.mxu0 0.0
    %1514 = vmatpush1.msra.mxu0 0.0
    %1515 = vmatprep.subr.mxu0 0.0
    %1516 = vmatpush1.msra.mxu0 0.0
    %1517 = vmatprep.subr.mxu0 0.0
    %1518 = vmatpush1.msra.mxu0 0.0
    %1519 = vmatprep.subr.mxu0 0.0
    %1520 = vmatpush1.msra.mxu0 0.0
    %1521 = vmatprep.subr.mxu0 0.0
    %1522 = vmatpush1.msra.mxu0 0.0
    %1523 = vmatprep.subr.mxu0 0.0
    %1524 = vmatpush1.msra.mxu0 0.0
    %1525 = vmatprep.subr.mxu0 0.0
    %1526 = vmatpush1.msra.mxu0 0.0
    %1527 = vmatprep.subr.mxu0 0.0
    %1528 = vmatpush1.msra.mxu0 0.0
    %1529 = vmatprep.subr.mxu0 0.0
    %1530 = vmatpush1.msra.mxu0 0.0
    %1531 = vmatprep.subr.mxu0 0.0
    %1532 = vmatpush1.msra.mxu0 0.0
    %1533 = vmatprep.subr.mxu0 0.0
    %1534 = vmatpush1.msra.mxu0 0.0
    %1535 = vmatprep.subr.mxu0 0.0
    %1536 = vmatpush1.msra.mxu0 0.0
    %1537 = vmatprep.subr.mxu0 0.0
    %1538 = vmatpush1.msra.mxu0 0.0
    %1539 = vmatprep.subr.mxu0 0.0
    %1540 = vmatpush1.msra.mxu0 0.0
    %1541 = vmatprep.subr.mxu0 0.0
    %1542 = vmatpush1.msra.mxu0 0.0
    %1543 = vmatprep.subr.mxu0 0.0
    %1544 = vmatpush1.msra.mxu0 0.0
    %1545 = vmatprep.subr.mxu0 0.0
    %1546 = vmatpush1.msra.mxu0 0.0
    %1547 = vmatprep.subr.mxu0 0.0
    %1548 = vmatpush1.msra.mxu0 0.0
    %1549 = vmatprep.subr.mxu0 0.0
    %1550 = vmatpush1.msra.mxu0 0.0
    %1551 = vmatprep.subr.mxu0 0.0
    %1552 = vmatpush1.msra.mxu0 0.0
    %1553 = vmatprep.subr.mxu0 0.0
    %1554 = vmatpush1.msra.mxu0 0.0
    %1555 = vmatprep.subr.mxu0 0.0
    %1556 = vmatpush1.msra.mxu0 0.0
    %1557 = vmatprep.subr.mxu0 0.0
    %1558 = vmatpush1.msra.mxu0 0.0
    %1559 = vmatprep.subr.mxu0 0.0
    %1560 = vmatpush1.msra.mxu0 0.0
    %1561 = vmatprep.mubr.f32.mxu0 0.0
    %1562 = vmatmul.mubr.f32.gmra.mrb[0].mxu0 %v1474
    %v1563 = vpop.f32.mrb[0].mxu0
    %v1564 = vadd.f32 %v1471, %v1563
    %v1565 = vpop.f32.mrb[0].mxu0
    %1566 = vmatprep.mubr.f32.mxu0 0.0
    %1567 = vmatmul.mubr.f32.gmra.mrb[0].mxu0 %v1477
    %v1568 = vpop.f32.mrb[0].mxu0
    %v1569 = vadd.f32 %v1471, %v1568
    %v1570 = vpop.f32.mrb[0].mxu0
    %1571 = vmatprep.mubr.f32.mxu0 0.0
    %1572 = vmatmul.mubr.f32.gmra.mrb[0].mxu0 %v1480
    %v1573 = vpop.f32.mrb[0].mxu0
    %v1574 = vadd.f32 %v1471, %v1573
    %v1575 = vpop.f32.mrb[0].mxu0
    %1576 = vmatprep.mubr.f32.mxu0 0.0
    %1577 = vmatmul.mubr.f32.gmra.mrb[0].mxu0 %v1483
    %v1578 = vpop.f32.mrb[0].mxu0
    %v1579 = vadd.f32 %v1471, %v1578
    %v1580 = vpop.f32.mrb[0].mxu0
    %1581 = vmatprep.mubr.f32.mxu0 0.0
    %1582 = vmatmul.mubr.f32.gmra.mrb[0].mxu0 %v1486
    %v1583 = vpop.f32.mrb[0].mxu0
    %v1584 = vadd.f32 %v1471, %v1583
    %v1585 = vpop.f32.mrb[0].mxu0
    %1586 = vmatprep.mubr.f32.mxu0 0.0
    %1587 = vmatmul.mubr.f32.gmra.mrb[0].mxu0 %v1489
    %v1588 = vpop.f32.mrb[0].mxu0
    %v1589 = vadd.f32 %v1471, %v1588
    %v1590 = vpop.f32.mrb[0].mxu0
    %1591 = vmatprep.mubr.f32.mxu0 0.0
    %1592 = vmatmul.mubr.f32.gmra.mrb[0].mxu0 %v1492
    %v1593 = vpop.f32.mrb[0].mxu0
    %v1594 = vadd.f32 %v1471, %v1593
    %v1595 = vpop.f32.mrb[0].mxu0
    %1596 = vmatprep.mubr.f32.mxu0 0.0
    %1597 = vmatmul.mubr.f32.gmra.mrb[0].mxu0 %v1495
    %v1598 = vpop.f32.mrb[0].mxu0
    %v1599 = vadd.f32 %v1471, %v1598
    %v1600 = vpop.f32.mrb[0].mxu0
    %1601 = vdwg.mxu0
    %v1602 = vlaneseq
    %v1603 = vand.u32 %v1602, 127
    %vm1604 = vcmp.lt.s32.totalorder %v1603, 2
    %v1605 = vsel %vm1604, %v1564, -inf
    %v1606 = vsel %vm1604, %v1569, -inf
    %v1607 = vsel %vm1604, %v1574, -inf
    %v1608 = vsel %vm1604, %v1579, -inf
    %v1609 = vsel %vm1604, %v1584, -inf
    %v1610 = vsel %vm1604, %v1589, -inf
    %v1611 = vsel %vm1604, %v1594, -inf
    %v1612 = vsel %vm1604, %v1599, -inf
    %vm1613 = vcmask 23552
    %v1614 = vsel %vm1613, %v1605, -inf
    %1615 = vmax.xlane.f32.xlu0 %v1614
    %v1616 = vpop.xlane.xlu0 %1615
    %v1617 = vsel %vm1613, %v1606, -inf
    %1618 = vmax.xlane.f32.xlu0 %v1617
    %v1619 = vpop.xlane.xlu0 %1618
    %v1620 = vsel %vm1613, %v1607, -inf
    %1621 = vmax.xlane.f32.xlu0 %v1620
    %v1622 = vpop.xlane.xlu0 %1621
    %v1623 = vsel %vm1613, %v1608, -inf
    %1624 = vmax.xlane.f32.xlu0 %v1623
    %v1625 = vpop.xlane.xlu0 %1624
    %v1626 = vsel %vm1613, %v1609, -inf
    %1627 = vmax.xlane.f32.xlu0 %v1626
    %v1628 = vpop.xlane.xlu0 %1627
    %v1629 = vsel %vm1613, %v1610, -inf
    %1630 = vmax.xlane.f32.xlu0 %v1629
    %v1631 = vpop.xlane.xlu0 %1630
    %v1632 = vsel %vm1613, %v1611, -inf
    %1633 = vmax.xlane.f32.xlu0 %v1632
    %v1634 = vpop.xlane.xlu0 %1633
    %v1635 = vsel %vm1613, %v1612, -inf
    %1636 = vmax.xlane.f32.xlu0 %v1635
    %v1637 = vpop.xlane.xlu0 %1636
    %v1638 = vsub.f32 %v1605, %v1616
    %v1639 = vsub.f32 %v1606, %v1619
    %v1640 = vsub.f32 %v1607, %v1622
    %v1641 = vsub.f32 %v1608, %v1625
    %v1642 = vsub.f32 %v1609, %v1628
    %v1643 = vsub.f32 %v1610, %v1631
    %v1644 = vsub.f32 %v1611, %v1634
    %v1645 = vsub.f32 %v1612, %v1637
    %v1646 = vmul.f32 %v1638, 1.442695
    %v1647 = vpow.pop %v1646
    %v1648 = vmul.f32 %v1639, 1.442695
    %v1649 = vpow.pop %v1648
    %v1650 = vmul.f32 %v1640, 1.442695
    %v1651 = vpow.pop %v1650
    %v1652 = vmul.f32 %v1641, 1.442695
    %v1653 = vpow.pop %v1652
    %v1654 = vmul.f32 %v1642, 1.442695
    %v1655 = vpow.pop %v1654
    %v1656 = vmul.f32 %v1643, 1.442695
    %v1657 = vpow.pop %v1656
    %v1658 = vmul.f32 %v1644, 1.442695
    %v1659 = vpow.pop %v1658
    %v1660 = vmul.f32 %v1645, 1.442695
    %v1661 = vpow.pop %v1660
    %v1662 = vsel %vm1613, %v1647, 0.0
    %1663 = vadd.xlane.f32.xlu0 %v1662
    %v1664 = vpop.xlane.xlu0 %1663
    %v1665 = vsel %vm1613, %v1649, 0.0
    %1666 = vadd.xlane.f32.xlu0 %v1665
    %v1667 = vpop.xlane.xlu0 %1666
    %v1668 = vsel %vm1613, %v1651, 0.0
    %1669 = vadd.xlane.f32.xlu0 %v1668
    %v1670 = vpop.xlane.xlu0 %1669
    %v1671 = vsel %vm1613, %v1653, 0.0
    %1672 = vadd.xlane.f32.xlu0 %v1671
    %v1673 = vpop.xlane.xlu0 %1672
    %v1674 = vsel %vm1613, %v1655, 0.0
    %1675 = vadd.xlane.f32.xlu0 %v1674
    %v1676 = vpop.xlane.xlu0 %1675
    %v1677 = vsel %vm1613, %v1657, 0.0
    %1678 = vadd.xlane.f32.xlu0 %v1677
    %v1679 = vpop.xlane.xlu0 %1678
    %v1680 = vsel %vm1613, %v1659, 0.0
    %1681 = vadd.xlane.f32.xlu0 %v1680
    %v1682 = vpop.xlane.xlu0 %1681
    %v1683 = vsel %vm1613, %v1661, 0.0
    %1684 = vadd.xlane.f32.xlu0 %v1683
    %v1685 = vpop.xlane.xlu0 %1684
    %v1686 = vrcp.pop %v1664
    %v1687 = vmul.f32 %v1647, %v1686
    %v1688 = vrcp.pop %v1667
    %v1689 = vmul.f32 %v1649, %v1688
    %v1690 = vrcp.pop %v1670
    %v1691 = vmul.f32 %v1651, %v1690
    %v1692 = vrcp.pop %v1673
    %v1693 = vmul.f32 %v1653, %v1692
    %v1694 = vrcp.pop %v1676
    %v1695 = vmul.f32 %v1655, %v1694
    %v1696 = vrcp.pop %v1679
    %v1697 = vmul.f32 %v1657, %v1696
    %v1698 = vrcp.pop %v1682
    %v1699 = vmul.f32 %v1659, %v1698
    %v1700 = vrcp.pop %v1685
    %v1701 = vmul.f32 %v1661, %v1700
    %v1702 = vsel %vm1604, %v1687, %v1564
    %v1703 = vsel %vm1604, %v1689, %v1569
    %v1704 = vsel %vm1604, %v1691, %v1574
    %v1705 = vsel %vm1604, %v1693, %v1579
    %v1706 = vsel %vm1604, %v1695, %v1584
    %v1707 = vsel %vm1604, %v1697, %v1589
    %v1708 = vsel %vm1604, %v1699, %v1594
    %v1709 = vsel %vm1604, %v1701, %v1599
    %1710 = vst.msk [vmem:[%s14] sm:$0xff] %vm1613, %v1702
    %1711 = vst.msk [vmem:[%s14 + $0x8] sm:$0xff] %vm1613, %v1703
    %1712 = vst.msk [vmem:[%s14 + $0x10] sm:$0xff] %vm1613, %v1704
    %1713 = vst.msk [vmem:[%s14 + $0x18] sm:$0xff] %vm1613, %v1705
    %1714 = vst.msk [vmem:[%s14 + $0x20] sm:$0xff] %vm1613, %v1706
    %1715 = vst.msk [vmem:[%s14 + $0x28] sm:$0xff] %vm1613, %v1707
    %1716 = vst.msk [vmem:[%s14 + $0x30] sm:$0xff] %vm1613, %v1708
    %1717 = vst.msk [vmem:[%s14 + $0x38] sm:$0xff] %vm1613, %v1709
    // Predicated region
    $region58: #{tpu_custom_call.1} parent=1 // pred_check
      _
    $region59: #{tpu_custom_call.1} parent=1 // pred_check_branch
      %1719 = sbr.rel (0) target = $region61
    $region60: #{tpu_custom_call.1} parent=1 // pred_region
      _
    $region61: #{tpu_custom_call.1} parent=1 // pred_fallthru
      _
    // Predicated region
    $region62: #{tpu_custom_call.1} parent=1 // pred_check
      _
    $region63: #{tpu_custom_call.1} parent=1 // pred_check_branch
      %1721 = sbr.rel (0) target = $region65
    $region64: #{tpu_custom_call.1} parent=1 // pred_region
      %s1723 = ssub.s32 128, 128
      %1724 = vsyncadd [#allocation4], %s1723
      %s1726 = sshll.u32 [#allocation3], 4
      %s1727 = int_to_ptr.vmem [resolvable:$true] %s1726
      %1729 = dma.vmem_to_hbm [thread:$0]  %s1727, 128, %s15, [#allocation4]
    $region65: #{tpu_custom_call.1} parent=1 // pred_fallthru
      _
    // Predicated region
    $region66: #{tpu_custom_call.1} parent=1 // pred_check
      _
    $region67: #{tpu_custom_call.1} parent=1 // pred_check_branch
      %1731 = sbr.rel (0) target = $region69
    $region68: #{tpu_custom_call.1} parent=1 // pred_region
      %s1733 = ssub.s32 128, 128
      %1734 = vsyncadd [#allocation6], %s1733
      %s1736 = sshll.u32 [#allocation5], 4
      %s1737 = int_to_ptr.vmem [resolvable:$true] %s1736
      %1739 = dma.vmem_to_hbm [thread:$0]  %s1737, 128, %s16, [#allocation6]
    $region69: #{tpu_custom_call.1} parent=1 // pred_fallthru
      _
    // Predicated region
    $region70: #{tpu_custom_call.1} parent=1 // pred_check
      _
    $region71: #{tpu_custom_call.1} parent=1 // pred_check_branch
      %1741 = sbr.rel (0) target = $region73
    $region72: #{tpu_custom_call.1} parent=1 // pred_region
      _
    $region73: #{tpu_custom_call.1} parent=1 // pred_fallthru
      _
    // Predicated region
    $region74: #{tpu_custom_call.1} parent=1 // pred_check
      _
    $region75: #{tpu_custom_call.1} parent=1 // pred_check_branch
      %1743 = sbr.rel (0) target = $region77
    $region76: #{tpu_custom_call.1} parent=1 // pred_region
      %1744 = dma.done [#allocation4], 128
    $region77: #{tpu_custom_call.1} parent=1 // pred_fallthru
      _
    // Predicated region
    $region78: #{tpu_custom_call.1} parent=1 // pred_check
      _
    $region79: #{tpu_custom_call.1} parent=1 // pred_check_branch
      %1746 = sbr.rel (0) target = $region81
    $region80: #{tpu_custom_call.1} parent=1 // pred_region
      %1747 = dma.done [#allocation6], 128
    $region81: #{tpu_custom_call.1} parent=1 // pred_fallthru
      _
    %1748 = vsyncpa [#allocation4], 1
    %1749 = vsyncpa [#allocation6], 1

</llo_original>
